<compile_context>
chip_gen: v7x
topology: tpu7x:2x2x1
jax: 0.10.0
libtpu: 0.0.40
codegen_flags: <defaults>
</compile_context>

<pallas_src>
import jax
import jax.numpy as jnp
from jax.experimental import pallas as pl
from jax.experimental.pallas import tpu as pltpu

BN_EPS = 1e-5
LANE = 128
DEFAULT_TILE_L = 512


def _round_up(n, m):
    return ((n + m - 1) // m) * m


def _choose_tile_l(L, target=DEFAULT_TILE_L):
    """Largest multiple-of-8 divisor of L that is <= target (falls back to full L)."""
    if L <= target:
        return L
    start = target - (target % 8)
    for t in range(start, 7, -8):
        if L % t == 0:
            return t
    # TODO(synk): mask a ragged final tile instead of falling back to full-length blocks.
    return L


def _vmem_limit_bytes():
    # ~3/4 of physical VMEM: ~48 MiB on v7x (64 MiB/TC), ~96 MiB on v5e/v6e (128 MiB).
    try:
        cap = int(pltpu.get_tpu_info().vmem_capacity_bytes)
        return max(32 * 1024 * 1024, min(96 * 1024 * 1024, (cap * 3) // 4))
    except Exception:
        return 48 * 1024 * 1024


def _elu(y):
    # ELU(alpha=1): y if y > 0 else exp(y) - 1   (clamp arg of exp for safety)
    return jnp.where(y > 0, y, jnp.exp(jnp.minimum(y, 0.0)) - 1.0)


def _neighbor_rows(x, e_ref, row):
    """x: (T, C) tile; e_ref: (2, C) halo rows (row before tile / row after tile).
    Returns (x_prev, x_next) with x_prev[l] = x[l-1], x_next[l] = x[l+1] (halo at edges).
    `row` is the hoisted (T, C) row-iota (computed once per kernel)."""
    T = x.shape[0]
    x_prev = jnp.where(row == 0, e_ref[0:1, :], pltpu.roll(x, shift=1, axis=0))
    x_next = jnp.where(row == T - 1, e_ref[1:2, :], pltpu.roll(x, shift=T - 1, axis=0))
    return x_prev, x_next


def _edges(a, tile_l):
    """a: (B, L, C).  Returns (B, nt, 2, C): [..., 0, :] = row just before each tile,
    [..., 1, :] = row just after each tile (zeros at the global sequence boundaries)."""
    B, L, C = a.shape
    nt = L // tile_l
    zero = jnp.zeros((B, 1, C), a.dtype)
    prev_rows = a[:, tile_l - 1:L - 1:tile_l, :]          # (B, nt-1, C)
    next_rows = a[:, tile_l:L:tile_l, :]                  # (B, nt-1, C)
    e_prev = jnp.concatenate([zero, prev_rows], axis=1)   # (B, nt, C)
    e_next = jnp.concatenate([next_rows, zero], axis=1)   # (B, nt, C)
    return jnp.stack([e_prev, e_next], axis=2)            # (B, nt, 2, C)


# --------------------------- stage 1: conv1 + downsample ---------------------------
def _stage1_kernel(x_ref, e_ref, wp_ref, wc_ref, wn_ref, b_ref,
                   z1_ref, zd_ref, st_ref):
    # x_ref: (T, Cip) f32 ; e_ref: (2, Cip) f32 halo rows
    # wp/wn: (Cip, Cp) bf16 (prev/next taps) ; wc: (Cip, 2*Cp) bf16 (center tap | 1x1 ds)
    # b_ref: (1, 2*Cp) f32
    cp = z1_ref.shape[-1]
    x = x_ref[...]
    row = jax.lax.broadcasted_iota(jnp.int32, x.shape, 0)       # hoisted, reused
    xp, xn = _neighbor_rows(x, e_ref, row)

    zc = jnp.dot(x.astype(jnp.bfloat16), wc_ref[...],
                 preferred_element_type=jnp.float32) + b_ref[...]          # (T, 2*Cp)
    z1 = (zc[:, :cp]
          + jnp.dot(xp.astype(jnp.bfloat16), wp_ref[...],
                    preferred_element_type=jnp.float32)
          + jnp.dot(xn.astype(jnp.bfloat16), wn_ref[...],
                    preferred_element_type=jnp.float32))                    # conv1 pre-BN
    zd = zc[:, cp:]                                                         # downsample pre-BN

    z1_ref[...] = z1.astype(z1_ref.dtype)                                   # bf16 store
    zd_ref[...] = zd.astype(zd_ref.dtype)
    # per-tile partial stats for the global (training-mode) BatchNorm reductions (f32)
    st_ref[...] = jnp.concatenate(
        [jnp.sum(z1, axis=0, keepdims=True),
         jnp.sum(z1 * z1, axis=0, keepdims=True),
         jnp.sum(zd, axis=0, keepdims=True),
         jnp.sum(zd * zd, axis=0, keepdims=True),
         jnp.zeros((4, cp), jnp.float32)], axis=0)


# ------------------------------ stage 2: BN1 -> ELU -> conv2 ------------------------
def _stage2_kernel(z1_ref, ye_ref, sc1_ref, sh1_ref, w2_ref, b2_ref,
                   z2_ref, st_ref):
    # z1_ref: (T, Cp) bf16 ; ye_ref: (2, Cp) f32 (halo rows, already BN1+ELU'd)
    # sc1/sh1/b2: (1, Cp) f32 ; w2_ref: (3, Cp, Cp) bf16 (tap-indexed)
    cp = z2_ref.shape[-1]
    y = _elu(z1_ref[...].astype(jnp.float32) * sc1_ref[...] + sh1_ref[...])  # BN1 + ELU (f32)
    row = jax.lax.broadcasted_iota(jnp.int32, y.shape, 0)
    yp, yn = _neighbor_rows(y, ye_ref, row)

    z2 = (jnp.dot(yp.astype(jnp.bfloat16), w2_ref[0], preferred_element_type=jnp.float32)
          + jnp.dot(y.astype(jnp.bfloat16), w2_ref[1], preferred_element_type=jnp.float32)
          + jnp.dot(yn.astype(jnp.bfloat16), w2_ref[2], preferred_element_type=jnp.float32)
          + b2_ref[...])

    z2_ref[...] = z2.astype(z2_ref.dtype)                                    # bf16 store
    st_ref[...] = jnp.concatenate(
        [jnp.sum(z2, axis=0, keepdims=True),
         jnp.sum(z2 * z2, axis=0, keepdims=True),
         jnp.zeros((6, cp), jnp.float32)], axis=0)


# ------------ stage 3: BN2 -> ECA scale -> add BN'd downsample -> ELU (streaming) ----
def _stage3_kernel(z2_ref, zd_ref, att_ref, sc2_ref, sh2_ref, scd_ref, shd_ref, o_ref):
    y = z2_ref[...].astype(jnp.float32) * sc2_ref[...] + sh2_ref[...]        # BN2 folded
    h = zd_ref[...].astype(jnp.float32) * scd_ref[...] + shd_ref[...]        # downsample BN
    o_ref[...] = _elu(y * att_ref[...] + h).astype(o_ref.dtype)


# ------------------------------------ wrapper ---------------------------------------
def eca_basic_block(x_ncl, params, *, tile_l=DEFAULT_TILE_L):
    """x_ncl: (B, Cin, L) like the PyTorch module; returns (B, C, L)."""
    B, Cin, L = x_ncl.shape
    C = params["w1"].shape[2]
    cip = _round_up(Cin, LANE)
    cp = _round_up(C, LANE)
    T = _choose_tile_l(L, tile_l)
    nt = L // T

    # NCL -> NLC, pad channels to lane width (padded channels get zero weights/gamma/beta
    # so they stay exactly zero and are sliced off at the end).
    x = jnp.transpose(x_ncl, (0, 2, 1)).astype(jnp.float32)
    x = jnp.pad(x, ((0, 0), (0, 0), (0, cip - Cin)))

    pad_c = lambda v: jnp.pad(v, ((0, 0), (0, cp - C)))

    # Per-tap conv1 weights; the center tap also carries the 1x1 downsample as extra N
    # columns (prev/next taps stay N=Cp, so the downsample costs exactly 1x its K).
    w1p = jnp.pad(params["w1"], ((0, 0), (0, cip - Cin), (0, cp - C)))       # (3, cip, cp)
    wd = jnp.pad(params["wd"], ((0, cip - Cin), (0, cp - C)))                # (cip, cp)
    w_prev = w1p[0].astype(jnp.bfloat16)
    w_next = w1p[2].astype(jnp.bfloat16)
    w_cc = jnp.concatenate([w1p[1], wd], axis=1).astype(jnp.bfloat16)        # (cip, 2*cp)
    b_cat = jnp.concatenate([pad_c(params["b1"]), pad_c(params["bd"])], axis=1)

    w2 = jnp.pad(params["w2"], ((0, 0), (0, cp - C), (0, cp - C))).astype(jnp.bfloat16)
    b2 = pad_c(params["b2"])

    cparams = pltpu.CompilerParams(
        dimension_semantics=("parallel", "parallel"),   # shard B x nt blocks across TCs
        vmem_limit_bytes=_vmem_limit_bytes())

    grid = (B, nt)
    act_spec = lambda c: pl.BlockSpec((None, T, c), lambda b, j: (b, j, 0))
    edge_spec = lambda c: pl.BlockSpec((None, None, 2, c), lambda b, j: (b, j, 0, 0))
    vec_spec = lambda c: pl.BlockSpec((1, c), lambda b, j: (0, 0))
    st_spec = pl.BlockSpec((None, None, 8, cp), lambda b, j: (b, j, 0, 0))
    full_spec = lambda shape: pl.BlockSpec(shape, lambda b, j: (0,) * len(shape))

    # --- stage 1: per-tap conv1 + fused 1x1 downsample (+ BN1/BNd partial stats) ---
    x_edges = _edges(x, T)                                                   # (B, nt, 2, cip)
    z1, zd, st1 = pl.pallas_call(
        _stage1_kernel,
        grid=grid,
        in_specs=[act_spec(cip), edge_spec(cip),
                  full_spec((cip, cp)), full_spec((cip, 2 * cp)), full_spec((cip, cp)),
                  full_spec((1, 2 * cp))],
        out_specs=(act_spec(cp), act_spec(cp), st_spec),
        out_shape=(jax.ShapeDtypeStruct((B, L, cp), jnp.bfloat16),
                   jax.ShapeDtypeStruct((B, L, cp), jnp.bfloat16),
                   jax.ShapeDtypeStruct((B, nt, 8, cp), jnp.float32)),
        compiler_params=cparams,
    )(x, x_edges, w_prev, w_cc, w_next, b_cat)

    # Fold BatchNorm (training-mode batch stats over B*L) into per-channel scale/shift.
    n = jnp.float32(B * L)

    def _fold(s, q, gamma, beta):
        mean = s / n
        var = jnp.maximum(q / n - mean * mean, 0.0)
        scale = gamma[0] * jax.lax.rsqrt(var + BN_EPS)
        return scale[None, :], beta - (mean * scale)[None, :]

    st1s = jnp.sum(st1, axis=(0, 1))
    sc1, sh1 = _fold(st1s[0], st1s[1], pad_c(params["g1"]), pad_c(params["be1"]))
    scd, shd = _fold(st1s[2], st1s[3], pad_c(params["gd"]), pad_c(params["bed"]))

    # Halo rows for conv2 = BN1+ELU of the neighbouring z1 rows (zero at global edges,
    # matching the conv's zero padding of its *input* y).
    y_edges = _elu(_edges(z1, T).astype(jnp.float32) * sc1 + sh1)            # (B, nt, 2, cp)
    y_edges = y_edges.at[:, 0, 0, :].set(0.0)
    y_edges = y_edges.at[:, nt - 1, 1, :].set(0.0)

    # --- stage 2: BN1 -> ELU -> conv2 (+ BN2 partial stats) ---
    z2, st2 = pl.pallas_call(
        _stage2_kernel,
        grid=grid,
        in_specs=[act_spec(cp), edge_spec(cp), vec_spec(cp), vec_spec(cp),
                  full_spec((3, cp, cp)), vec_spec(cp)],
        out_specs=(act_spec(cp), st_spec),
        out_shape=(jax.ShapeDtypeStruct((B, L, cp), jnp.bfloat16),
                   jax.ShapeDtypeStruct((B, nt, 8, cp), jnp.float32)),
        compiler_params=cparams,
    )(z1, y_edges, sc1, sh1, w2, b2)

    st2s = jnp.sum(st2, axis=(0, 1))
    sc2, sh2 = _fold(st2s[0], st2s[1], pad_c(params["g2"]), pad_c(params["be2"]))

    # ECA attention from the already-emitted per-tile z2 sums (mean_L(BN2(z2)) is exactly
    # sc2 * sum_L(z2)/L + sh2), k=3 channel conv + sigmoid on a tiny (B, cp) array in JAX.
    sum_z2_b = jnp.sum(st2[:, :, 0, :], axis=1)                              # (B, cp)
    p = sc2 * (sum_z2_b / jnp.float32(L)) + sh2                              # (B, cp)
    we = params["w_eca"].reshape(3)
    zcol = jnp.zeros((B, 1), jnp.float32)
    s_eca = (we[0] * jnp.concatenate([zcol, p[:, :-1]], axis=1)
             + we[1] * p
             + we[2] * jnp.concatenate([p[:, 1:], zcol], axis=1))
    att = jax.nn.sigmoid(s_eca)[:, None, :]                                  # (B, 1, cp)

    # --- stage 3: BN2 -> ECA scale -> residual add -> ELU (pure streaming) ---
    out = pl.pallas_call(
        _stage3_kernel,
        grid=grid,
        in_specs=[act_spec(cp), act_spec(cp),
                  pl.BlockSpec((None, 1, cp), lambda b, j: (b, 0, 0)),
                  vec_spec(cp), vec_spec(cp), vec_spec(cp), vec_spec(cp)],
        out_specs=act_spec(cp),
        out_shape=jax.ShapeDtypeStruct((B, L, cp), jnp.float32),
        compiler_params=cparams,
    )(z2, zd, att, sc2, sh2, scd, shd)

    return jnp.transpose(out[:, :, :C], (0, 2, 1))                           # NLC -> NCL


# --------------------------- pure-JAX reference (same math) -------------------------
def _reference(x_ncl, params):
    x = jnp.transpose(x_ncl, (0, 2, 1)).astype(jnp.float32)                  # (B, L, Cin)

    def conv3(inp, w, b):
        Bb, Ll, Ci = inp.shape
        Co = w.shape[2]
        wb = w.astype(jnp.bfloat16)
        z = [jnp.dot(inp.reshape(Bb * Ll, Ci).astype(jnp.bfloat16), wb[k],
                     preferred_element_type=jnp.float32).reshape(Bb, Ll, Co)
             for k in range(3)]
        zero = jnp.zeros((Bb, 1, Co), jnp.float32)
        return (jnp.concatenate([zero, z[0][:, :-1]], 1) + z[1]
                + jnp.concatenate([z[2][:, 1:], zero], 1)) + b

    def bn(y, g, be):
        mu = jnp.mean(y, axis=(0, 1), keepdims=True)
        var = jnp.mean((y - mu) * (y - mu), axis=(0, 1), keepdims=True)
        return g * (y - mu) * jax.lax.rsqrt(var + BN_EPS) + be

    y = _elu(bn(conv3(x, params["w1"], params["b1"]), params["g1"], params["be1"]))
    y = bn(conv3(y, params["w2"], params["b2"]), params["g2"], params["be2"])
    p = jnp.mean(y, axis=1)                                                  # (B, C)
    w = params["w_eca"].reshape(3)
    zc = jnp.zeros((p.shape[0], 1), jnp.float32)
    s = (w[0] * jnp.concatenate([zc, p[:, :-1]], 1) + w[1] * p
         + w[2] * jnp.concatenate([p[:, 1:], zc], 1))
    y = y * jax.nn.sigmoid(s)[:, None, :]
    Bb, Ll, Cin = x.shape
    h = jnp.dot(x.reshape(Bb * Ll, Cin).astype(jnp.bfloat16),
                params["wd"].astype(jnp.bfloat16),
                preferred_element_type=jnp.float32).reshape(Bb, Ll, -1) + params["bd"]
    h = bn(h, params["gd"], params["bed"])
    return jnp.transpose(_elu(y + h), (0, 2, 1))


def make_params(key, cin, c):
    ks = jax.random.split(key, 16)
    n = lambda k, shape, s=0.3: s * jax.random.normal(k, shape, dtype=jnp.float32)
    return {
        "w1": n(ks[0], (3, cin, c)), "b1": n(ks[1], (1, c), 0.1),
        "g1": 1.0 + n(ks[2], (1, c), 0.1), "be1": n(ks[3], (1, c), 0.1),
        "w2": n(ks[4], (3, c, c)), "b2": n(ks[5], (1, c), 0.1),
        "g2": 1.0 + n(ks[6], (1, c), 0.1), "be2": n(ks[7], (1, c), 0.1),
        "w_eca": n(ks[8], (1, 3), 0.5),
        "wd": n(ks[9], (cin, c)), "bd": n(ks[10], (1, c), 0.1),
        "gd": 1.0 + n(ks[11], (1, c), 0.1), "bed": n(ks[12], (1, c), 0.1),
    }


if __name__ == "__main__":
    B, CIN, C, L = 2, 4, 8, 16
    key = jax.random.PRNGKey(0)
    kx, kp = jax.random.split(key)
    x = jax.random.normal(kx, (B, CIN, L), dtype=jnp.float32)                # PyTorch NCL input
    params = make_params(kp, CIN, C)

    out = jax.block_until_ready(jax.jit(eca_basic_block)(x, params))
    ref = jax.block_until_ready(_reference(x, params))

    assert out.shape == (B, C, L)
    max_err = float(jnp.max(jnp.abs(out - ref)))
    # bf16 inter-stage activation storage costs ~3 mantissa bits -> slightly looser bound.
    assert jnp.allclose(out, ref, atol=2e-2, rtol=2e-2), f"mismatch vs reference: {max_err}"

    print("KERNEL_OK")
</pallas_src>

<mosaic_0001>
module attributes {stable_mosaic.version = 11 : i64} {
  func.func @_stage1_kernel(%arg0: i32, %arg1: i32, %arg2: memref<1x16x128xf32, #tpu.memory_space<vmem>>, %arg3: memref<1x1x2x128xf32, #tpu.memory_space<vmem>>, %arg4: memref<128x128xbf16, #tpu.memory_space<vmem>>, %arg5: memref<128x256xbf16, #tpu.memory_space<vmem>>, %arg6: memref<128x128xbf16, #tpu.memory_space<vmem>>, %arg7: memref<1x256xf32, #tpu.memory_space<vmem>>, %arg8: memref<1x16x128xbf16, #tpu.memory_space<vmem>>, %arg9: memref<1x16x128xbf16, #tpu.memory_space<vmem>>, %arg10: memref<1x1x8x128xf32, #tpu.memory_space<vmem>>) attributes {dimension_semantics = [#tpu.dimension_semantics<parallel>, #tpu.dimension_semantics<parallel>], iteration_bounds = array<i64: 2, 1>, scalar_prefetch = 0 : i64, scratch_operands = 0 : i64, tpu.core_type = #tpu.core_type<tc>, window_params = [{transform_indices = @transform_0, window_bounds = array<i64: 1, 16, 128>}, {transform_indices = @transform_1, window_bounds = array<i64: 1, 1, 2, 128>}, {pipeline_mode = #tpu.pipeline_mode<synchronous>, transform_indices = @transform_2, window_bounds = array<i64: 128, 128>}, {pipeline_mode = #tpu.pipeline_mode<synchronous>, transform_indices = @transform_3, window_bounds = array<i64: 128, 256>}, {pipeline_mode = #tpu.pipeline_mode<synchronous>, transform_indices = @transform_4, window_bounds = array<i64: 128, 128>}, {pipeline_mode = #tpu.pipeline_mode<synchronous>, transform_indices = @transform_5, window_bounds = array<i64: 1, 256>}, {transform_indices = @transform_6, window_bounds = array<i64: 1, 16, 128>}, {transform_indices = @transform_7, window_bounds = array<i64: 1, 16, 128>}, {transform_indices = @transform_8, window_bounds = array<i64: 1, 1, 8, 128>}]} {
    %c0 = arith.constant 0 : index
    %c0_0 = arith.constant 0 : index
    %c0_1 = arith.constant 0 : index
    %0 = vector.load %arg2[%c0, %c0_0, %c0_1] : memref<1x16x128xf32, #tpu.memory_space<vmem>>, vector<1x16x128xf32>
    %1 = vector.shape_cast %0 : vector<1x16x128xf32> to vector<16x128xf32>
    %2 = tpu.iota {dimensions = array<i32: 0>} : vector<16x128xi32>
    %c0_i32 = arith.constant 0 : i32
    %3 = vector.broadcast %c0_i32 : i32 to vector<16x128xi32>
    %4 = arith.cmpi eq, %2, %3 : vector<16x128xi32>
    %c0_2 = arith.constant 0 : index
    %c0_3 = arith.constant 0 : index
    %c0_4 = arith.constant 0 : index
    %c0_5 = arith.constant 0 : index
    %5 = vector.load %arg3[%c0_2, %c0_3, %c0_4, %c0_5] : memref<1x1x2x128xf32, #tpu.memory_space<vmem>>, vector<1x1x1x128xf32>
    %6 = vector.shape_cast %5 : vector<1x1x1x128xf32> to vector<1x128xf32>
    %c1_i32 = arith.constant 1 : i32
    %7 = tpu.dynamic_rotate %1 by %c1_i32 dim 0 : vector<16x128xf32>, i32 -> vector<16x128xf32>
    %8 = vector.shape_cast %6 : vector<1x128xf32> to vector<1x128xf32>
    %9 = vector.broadcast %8 : vector<1x128xf32> to vector<16x128xf32>
    %10 = arith.select %4, %9, %7 : vector<16x128xi1>, vector<16x128xf32>
    %c15_i32 = arith.constant 15 : i32
    %11 = vector.broadcast %c15_i32 : i32 to vector<16x128xi32>
    %12 = arith.cmpi eq, %2, %11 : vector<16x128xi32>
    %c0_6 = arith.constant 0 : index
    %c0_7 = arith.constant 0 : index
    %c1 = arith.constant 1 : index
    %c0_8 = arith.constant 0 : index
    %13 = vector.load %arg3[%c0_6, %c0_7, %c1, %c0_8] : memref<1x1x2x128xf32, #tpu.memory_space<vmem>>, vector<1x1x1x128xf32>
    %14 = vector.shape_cast %13 : vector<1x1x1x128xf32> to vector<1x128xf32>
    %c15_i32_9 = arith.constant 15 : i32
    %15 = tpu.dynamic_rotate %1 by %c15_i32_9 dim 0 : vector<16x128xf32>, i32 -> vector<16x128xf32>
    %16 = vector.shape_cast %14 : vector<1x128xf32> to vector<1x128xf32>
    %17 = vector.broadcast %16 : vector<1x128xf32> to vector<16x128xf32>
    %18 = arith.select %12, %17, %15 : vector<16x128xi1>, vector<16x128xf32>
    %19 = arith.truncf %1 : vector<16x128xf32> to vector<16x128xbf16>
    %c0_10 = arith.constant 0 : index
    %c0_11 = arith.constant 0 : index
    %20 = vector.load %arg5[%c0_10, %c0_11] : memref<128x256xbf16, #tpu.memory_space<vmem>>, vector<128x256xbf16>
    %cst = arith.constant dense<0.000000e+00> : vector<16x256xf32>
    %21 = tpu.matmul %19, %20, %cst {dimension_numbers = #tpu.dot_dimension_numbers<[1], [0], [0], [1], [0, 0, 1, 1], [], []>} : vector<16x128xbf16>, vector<128x256xbf16>, vector<16x256xf32> -> vector<16x256xf32>
    %c0_12 = arith.constant 0 : index
    %c0_13 = arith.constant 0 : index
    %22 = vector.load %arg7[%c0_12, %c0_13] : memref<1x256xf32, #tpu.memory_space<vmem>>, vector<1x256xf32>
    %23 = vector.broadcast %22 : vector<1x256xf32> to vector<16x256xf32>
    %24 = arith.addf %21, %23 : vector<16x256xf32>
    %25 = vector.extract_strided_slice %24 {offsets = [0, 0], sizes = [16, 128], strides = [1, 1]} : vector<16x256xf32> to vector<16x128xf32>
    %26 = arith.truncf %10 : vector<16x128xf32> to vector<16x128xbf16>
    %c0_14 = arith.constant 0 : index
    %c0_15 = arith.constant 0 : index
    %27 = vector.load %arg4[%c0_14, %c0_15] : memref<128x128xbf16, #tpu.memory_space<vmem>>, vector<128x128xbf16>
    %cst_16 = arith.constant dense<0.000000e+00> : vector<16x128xf32>
    %28 = tpu.matmul %26, %27, %cst_16 {dimension_numbers = #tpu.dot_dimension_numbers<[1], [0], [0], [1], [0, 0, 1, 1], [], []>} : vector<16x128xbf16>, vector<128x128xbf16>, vector<16x128xf32> -> vector<16x128xf32>
    %29 = arith.addf %25, %28 : vector<16x128xf32>
    %30 = arith.truncf %18 : vector<16x128xf32> to vector<16x128xbf16>
    %c0_17 = arith.constant 0 : index
    %c0_18 = arith.constant 0 : index
    %31 = vector.load %arg6[%c0_17, %c0_18] : memref<128x128xbf16, #tpu.memory_space<vmem>>, vector<128x128xbf16>
    %cst_19 = arith.constant dense<0.000000e+00> : vector<16x128xf32>
    %32 = tpu.matmul %30, %31, %cst_19 {dimension_numbers = #tpu.dot_dimension_numbers<[1], [0], [0], [1], [0, 0, 1, 1], [], []>} : vector<16x128xbf16>, vector<128x128xbf16>, vector<16x128xf32> -> vector<16x128xf32>
    %33 = arith.addf %29, %32 : vector<16x128xf32>
    %34 = vector.extract_strided_slice %24 {offsets = [0, 128], sizes = [16, 128], strides = [1, 1]} : vector<16x256xf32> to vector<16x128xf32>
    %35 = arith.truncf %33 : vector<16x128xf32> to vector<16x128xbf16>
    %c0_20 = arith.constant 0 : index
    %c0_21 = arith.constant 0 : index
    %c0_22 = arith.constant 0 : index
    %36 = vector.load %arg8[%c0_20, %c0_21, %c0_22] : memref<1x16x128xbf16, #tpu.memory_space<vmem>>, vector<1x16x128xbf16>
    %37 = vector.shape_cast %36 : vector<1x16x128xbf16> to vector<16x128xbf16>
    %38 = vector.shape_cast %35 : vector<16x128xbf16> to vector<1x16x128xbf16>
    tpu.vector_store %arg8[%c0_20, %c0_21, %c0_22], %38 {strides = array<i32>} : memref<1x16x128xbf16, #tpu.memory_space<vmem>>, vector<1x16x128xbf16>,
    %39 = arith.truncf %34 : vector<16x128xf32> to vector<16x128xbf16>
    %c0_23 = arith.constant 0 : index
    %c0_24 = arith.constant 0 : index
    %c0_25 = arith.constant 0 : index
    %40 = vector.load %arg9[%c0_23, %c0_24, %c0_25] : memref<1x16x128xbf16, #tpu.memory_space<vmem>>, vector<1x16x128xbf16>
    %41 = vector.shape_cast %40 : vector<1x16x128xbf16> to vector<16x128xbf16>
    %42 = vector.shape_cast %39 : vector<16x128xbf16> to vector<1x16x128xbf16>
    tpu.vector_store %arg9[%c0_23, %c0_24, %c0_25], %42 {strides = array<i32>} : memref<1x16x128xbf16, #tpu.memory_space<vmem>>, vector<1x16x128xbf16>,
    %cst_26 = arith.constant dense<0.000000e+00> : vector<128xf32>
    %43 = vector.multi_reduction <add>, %33, %cst_26 [0] : vector<16x128xf32> to vector<128xf32>
    %44 = vector.shape_cast %43 : vector<128xf32> to vector<1x128xf32>
    %45 = arith.mulf %33, %33 : vector<16x128xf32>
    %cst_27 = arith.constant dense<0.000000e+00> : vector<128xf32>
    %46 = vector.multi_reduction <add>, %45, %cst_27 [0] : vector<16x128xf32> to vector<128xf32>
    %47 = vector.shape_cast %46 : vector<128xf32> to vector<1x128xf32>
    %cst_28 = arith.constant dense<0.000000e+00> : vector<128xf32>
    %48 = vector.multi_reduction <add>, %34, %cst_28 [0] : vector<16x128xf32> to vector<128xf32>
    %49 = vector.shape_cast %48 : vector<128xf32> to vector<1x128xf32>
    %50 = arith.mulf %34, %34 : vector<16x128xf32>
    %cst_29 = arith.constant dense<0.000000e+00> : vector<128xf32>
    %51 = vector.multi_reduction <add>, %50, %cst_29 [0] : vector<16x128xf32> to vector<128xf32>
    %52 = vector.shape_cast %51 : vector<128xf32> to vector<1x128xf32>
    %cst_30 = arith.constant 0.000000e+00 : f32
    %53 = vector.broadcast %cst_30 : f32 to vector<4x128xf32>
    %54 = tpu.concatenate %44, %47, %49, %52, %53 in 0 : vector<1x128xf32>, vector<1x128xf32>, vector<1x128xf32>, vector<1x128xf32>, vector<4x128xf32> -> vector<8x128xf32>
    %c0_31 = arith.constant 0 : index
    %c0_32 = arith.constant 0 : index
    %c0_33 = arith.constant 0 : index
    %c0_34 = arith.constant 0 : index
    %55 = vector.load %arg10[%c0_31, %c0_32, %c0_33, %c0_34] : memref<1x1x8x128xf32, #tpu.memory_space<vmem>>, vector<1x1x8x128xf32>
    %56 = vector.shape_cast %55 : vector<1x1x8x128xf32> to vector<8x128xf32>
    %57 = vector.shape_cast %54 : vector<8x128xf32> to vector<1x1x8x128xf32>
    tpu.vector_store %arg10[%c0_31, %c0_32, %c0_33, %c0_34], %57 {strides = array<i32>} : memref<1x1x8x128xf32, #tpu.memory_space<vmem>>, vector<1x1x8x128xf32>,
    return
  }
  func.func @transform_0(%arg0: i32, %arg1: i32) -> (i32, i32, i32) {
    %c0_i32 = arith.constant 0 : i32
    %c0_i32_0 = arith.constant 0 : i32
    return %arg0, %arg1, %c0_i32 : i32, i32, i32
  }
  func.func @transform_1(%arg0: i32, %arg1: i32) -> (i32, i32, i32, i32) {
    %c0_i32 = arith.constant 0 : i32
    %c0_i32_0 = arith.constant 0 : i32
    %c0_i32_1 = arith.constant 0 : i32
    return %arg0, %arg1, %c0_i32, %c0_i32_0 : i32, i32, i32, i32
  }
  func.func @transform_2(%arg0: i32, %arg1: i32) -> (i32, i32) {
    %c0_i32 = arith.constant 0 : i32
    %c0_i32_0 = arith.constant 0 : i32
    %c0_i32_1 = arith.constant 0 : i32
    return %c0_i32, %c0_i32_0 : i32, i32
  }
  func.func @transform_3(%arg0: i32, %arg1: i32) -> (i32, i32) {
    %c0_i32 = arith.constant 0 : i32
    %c0_i32_0 = arith.constant 0 : i32
    %c0_i32_1 = arith.constant 0 : i32
    return %c0_i32, %c0_i32_0 : i32, i32
  }
  func.func @transform_4(%arg0: i32, %arg1: i32) -> (i32, i32) {
    %c0_i32 = arith.constant 0 : i32
    %c0_i32_0 = arith.constant 0 : i32
    %c0_i32_1 = arith.constant 0 : i32
    return %c0_i32, %c0_i32_0 : i32, i32
  }
  func.func @transform_5(%arg0: i32, %arg1: i32) -> (i32, i32) {
    %c0_i32 = arith.constant 0 : i32
    %c0_i32_0 = arith.constant 0 : i32
    %c0_i32_1 = arith.constant 0 : i32
    return %c0_i32, %c0_i32_0 : i32, i32
  }
  func.func @transform_6(%arg0: i32, %arg1: i32) -> (i32, i32, i32) {
    %c0_i32 = arith.constant 0 : i32
    %c0_i32_0 = arith.constant 0 : i32
    return %arg0, %arg1, %c0_i32 : i32, i32, i32
  }
  func.func @transform_7(%arg0: i32, %arg1: i32) -> (i32, i32, i32) {
    %c0_i32 = arith.constant 0 : i32
    %c0_i32_0 = arith.constant 0 : i32
    return %arg0, %arg1, %c0_i32 : i32, i32, i32
  }
  func.func @transform_8(%arg0: i32, %arg1: i32) -> (i32, i32, i32, i32) {
    %c0_i32 = arith.constant 0 : i32
    %c0_i32_0 = arith.constant 0 : i32
    %c0_i32_1 = arith.constant 0 : i32
    return %arg0, %arg1, %c0_i32, %c0_i32_0 : i32, i32, i32, i32
  }
}

module attributes {stable_mosaic.version = 11 : i64} {
  func.func @_stage2_kernel(%arg0: i32, %arg1: i32, %arg2: memref<1x16x128xbf16, #tpu.memory_space<vmem>>, %arg3: memref<1x1x2x128xf32, #tpu.memory_space<vmem>>, %arg4: memref<1x128xf32, #tpu.memory_space<vmem>>, %arg5: memref<1x128xf32, #tpu.memory_space<vmem>>, %arg6: memref<3x128x128xbf16, #tpu.memory_space<vmem>>, %arg7: memref<1x128xf32, #tpu.memory_space<vmem>>, %arg8: memref<1x16x128xbf16, #tpu.memory_space<vmem>>, %arg9: memref<1x1x8x128xf32, #tpu.memory_space<vmem>>) attributes {dimension_semantics = [#tpu.dimension_semantics<parallel>, #tpu.dimension_semantics<parallel>], iteration_bounds = array<i64: 2, 1>, scalar_prefetch = 0 : i64, scratch_operands = 0 : i64, tpu.core_type = #tpu.core_type<tc>, window_params = [{transform_indices = @transform_0, window_bounds = array<i64: 1, 16, 128>}, {transform_indices = @transform_1, window_bounds = array<i64: 1, 1, 2, 128>}, {pipeline_mode = #tpu.pipeline_mode<synchronous>, transform_indices = @transform_2, window_bounds = array<i64: 1, 128>}, {pipeline_mode = #tpu.pipeline_mode<synchronous>, transform_indices = @transform_3, window_bounds = array<i64: 1, 128>}, {pipeline_mode = #tpu.pipeline_mode<synchronous>, transform_indices = @transform_4, window_bounds = array<i64: 3, 128, 128>}, {pipeline_mode = #tpu.pipeline_mode<synchronous>, transform_indices = @transform_5, window_bounds = array<i64: 1, 128>}, {transform_indices = @transform_6, window_bounds = array<i64: 1, 16, 128>}, {transform_indices = @transform_7, window_bounds = array<i64: 1, 1, 8, 128>}]} {
    %c0 = arith.constant 0 : index
    %c0_0 = arith.constant 0 : index
    %c0_1 = arith.constant 0 : index
    %0 = vector.load %arg2[%c0, %c0_0, %c0_1] : memref<1x16x128xbf16, #tpu.memory_space<vmem>>, vector<1x16x128xbf16>
    %1 = vector.shape_cast %0 : vector<1x16x128xbf16> to vector<16x128xbf16>
    %2 = arith.extf %1 : vector<16x128xbf16> to vector<16x128xf32>
    %c0_2 = arith.constant 0 : index
    %c0_3 = arith.constant 0 : index
    %3 = vector.load %arg4[%c0_2, %c0_3] : memref<1x128xf32, #tpu.memory_space<vmem>>, vector<1x128xf32>
    %4 = vector.broadcast %3 : vector<1x128xf32> to vector<16x128xf32>
    %5 = arith.mulf %2, %4 : vector<16x128xf32>
    %c0_4 = arith.constant 0 : index
    %c0_5 = arith.constant 0 : index
    %6 = vector.load %arg5[%c0_4, %c0_5] : memref<1x128xf32, #tpu.memory_space<vmem>>, vector<1x128xf32>
    %7 = vector.broadcast %6 : vector<1x128xf32> to vector<16x128xf32>
    %8 = arith.addf %5, %7 : vector<16x128xf32>
    %cst = arith.constant 0.000000e+00 : f32
    %9 = vector.broadcast %cst : f32 to vector<16x128xf32>
    %10 = arith.cmpf ogt, %8, %9 : vector<16x128xf32>
    %cst_6 = arith.constant 0.000000e+00 : f32
    %11 = vector.broadcast %cst_6 : f32 to vector<16x128xf32>
    %12 = arith.minimumf %8, %11 : vector<16x128xf32>
    %13 = math.exp %12 : vector<16x128xf32>
    %cst_7 = arith.constant 1.000000e+00 : f32
    %14 = vector.broadcast %cst_7 : f32 to vector<16x128xf32>
    %15 = arith.subf %13, %14 : vector<16x128xf32>
    %16 = arith.select %10, %8, %15 : vector<16x128xi1>, vector<16x128xf32>
    %17 = tpu.iota {dimensions = array<i32: 0>} : vector<16x128xi32>
    %c0_i32 = arith.constant 0 : i32
    %18 = vector.broadcast %c0_i32 : i32 to vector<16x128xi32>
    %19 = arith.cmpi eq, %17, %18 : vector<16x128xi32>
    %c0_8 = arith.constant 0 : index
    %c0_9 = arith.constant 0 : index
    %c0_10 = arith.constant 0 : index
    %c0_11 = arith.constant 0 : index
    %20 = vector.load %arg3[%c0_8, %c0_9, %c0_10, %c0_11] : memref<1x1x2x128xf32, #tpu.memory_space<vmem>>, vector<1x1x1x128xf32>
    %21 = vector.shape_cast %20 : vector<1x1x1x128xf32> to vector<1x128xf32>
    %c1_i32 = arith.constant 1 : i32
    %22 = tpu.dynamic_rotate %16 by %c1_i32 dim 0 : vector<16x128xf32>, i32 -> vector<16x128xf32>
    %23 = vector.shape_cast %21 : vector<1x128xf32> to vector<1x128xf32>
    %24 = vector.broadcast %23 : vector<1x128xf32> to vector<16x128xf32>
    %25 = arith.select %19, %24, %22 : vector<16x128xi1>, vector<16x128xf32>
    %c15_i32 = arith.constant 15 : i32
    %26 = vector.broadcast %c15_i32 : i32 to vector<16x128xi32>
    %27 = arith.cmpi eq, %17, %26 : vector<16x128xi32>
    %c0_12 = arith.constant 0 : index
    %c0_13 = arith.constant 0 : index
    %c1 = arith.constant 1 : index
    %c0_14 = arith.constant 0 : index
    %28 = vector.load %arg3[%c0_12, %c0_13, %c1, %c0_14] : memref<1x1x2x128xf32, #tpu.memory_space<vmem>>, vector<1x1x1x128xf32>
    %29 = vector.shape_cast %28 : vector<1x1x1x128xf32> to vector<1x128xf32>
    %c15_i32_15 = arith.constant 15 : i32
    %30 = tpu.dynamic_rotate %16 by %c15_i32_15 dim 0 : vector<16x128xf32>, i32 -> vector<16x128xf32>
    %31 = vector.shape_cast %29 : vector<1x128xf32> to vector<1x128xf32>
    %32 = vector.broadcast %31 : vector<1x128xf32> to vector<16x128xf32>
    %33 = arith.select %27, %32, %30 : vector<16x128xi1>, vector<16x128xf32>
    %34 = arith.truncf %25 : vector<16x128xf32> to vector<16x128xbf16>
    %c0_16 = arith.constant 0 : index
    %c0_17 = arith.constant 0 : index
    %c0_18 = arith.constant 0 : index
    %35 = vector.load %arg6[%c0_16, %c0_17, %c0_18] : memref<3x128x128xbf16, #tpu.memory_space<vmem>>, vector<1x128x128xbf16>
    %36 = vector.shape_cast %35 : vector<1x128x128xbf16> to vector<128x128xbf16>
    %cst_19 = arith.constant dense<0.000000e+00> : vector<16x128xf32>
    %37 = tpu.matmul %34, %36, %cst_19 {dimension_numbers = #tpu.dot_dimension_numbers<[1], [0], [0], [1], [0, 0, 1, 1], [], []>} : vector<16x128xbf16>, vector<128x128xbf16>, vector<16x128xf32> -> vector<16x128xf32>
    %38 = arith.truncf %16 : vector<16x128xf32> to vector<16x128xbf16>
    %c1_20 = arith.constant 1 : index
    %c0_21 = arith.constant 0 : index
    %c0_22 = arith.constant 0 : index
    %39 = vector.load %arg6[%c1_20, %c0_21, %c0_22] : memref<3x128x128xbf16, #tpu.memory_space<vmem>>, vector<1x128x128xbf16>
    %40 = vector.shape_cast %39 : vector<1x128x128xbf16> to vector<128x128xbf16>
    %cst_23 = arith.constant dense<0.000000e+00> : vector<16x128xf32>
    %41 = tpu.matmul %38, %40, %cst_23 {dimension_numbers = #tpu.dot_dimension_numbers<[1], [0], [0], [1], [0, 0, 1, 1], [], []>} : vector<16x128xbf16>, vector<128x128xbf16>, vector<16x128xf32> -> vector<16x128xf32>
    %42 = arith.addf %37, %41 : vector<16x128xf32>
    %43 = arith.truncf %33 : vector<16x128xf32> to vector<16x128xbf16>
    %c2 = arith.constant 2 : index
    %c0_24 = arith.constant 0 : index
    %c0_25 = arith.constant 0 : index
    %44 = vector.load %arg6[%c2, %c0_24, %c0_25] : memref<3x128x128xbf16, #tpu.memory_space<vmem>>, vector<1x128x128xbf16>
    %45 = vector.shape_cast %44 : vector<1x128x128xbf16> to vector<128x128xbf16>
    %cst_26 = arith.constant dense<0.000000e+00> : vector<16x128xf32>
    %46 = tpu.matmul %43, %45, %cst_26 {dimension_numbers = #tpu.dot_dimension_numbers<[1], [0], [0], [1], [0, 0, 1, 1], [], []>} : vector<16x128xbf16>, vector<128x128xbf16>, vector<16x128xf32> -> vector<16x128xf32>
    %47 = arith.addf %42, %46 : vector<16x128xf32>
    %c0_27 = arith.constant 0 : index
    %c0_28 = arith.constant 0 : index
    %48 = vector.load %arg7[%c0_27, %c0_28] : memref<1x128xf32, #tpu.memory_space<vmem>>, vector<1x128xf32>
    %49 = vector.broadcast %48 : vector<1x128xf32> to vector<16x128xf32>
    %50 = arith.addf %47, %49 : vector<16x128xf32>
    %51 = arith.truncf %50 : vector<16x128xf32> to vector<16x128xbf16>
    %c0_29 = arith.constant 0 : index
    %c0_30 = arith.constant 0 : index
    %c0_31 = arith.constant 0 : index
    %52 = vector.load %arg8[%c0_29, %c0_30, %c0_31] : memref<1x16x128xbf16, #tpu.memory_space<vmem>>, vector<1x16x128xbf16>
    %53 = vector.shape_cast %52 : vector<1x16x128xbf16> to vector<16x128xbf16>
    %54 = vector.shape_cast %51 : vector<16x128xbf16> to vector<1x16x128xbf16>
    tpu.vector_store %arg8[%c0_29, %c0_30, %c0_31], %54 {strides = array<i32>} : memref<1x16x128xbf16, #tpu.memory_space<vmem>>, vector<1x16x128xbf16>,
    %cst_32 = arith.constant dense<0.000000e+00> : vector<128xf32>
    %55 = vector.multi_reduction <add>, %50, %cst_32 [0] : vector<16x128xf32> to vector<128xf32>
    %56 = vector.shape_cast %55 : vector<128xf32> to vector<1x128xf32>
    %57 = arith.mulf %50, %50 : vector<16x128xf32>
    %cst_33 = arith.constant dense<0.000000e+00> : vector<128xf32>
    %58 = vector.multi_reduction <add>, %57, %cst_33 [0] : vector<16x128xf32> to vector<128xf32>
    %59 = vector.shape_cast %58 : vector<128xf32> to vector<1x128xf32>
    %cst_34 = arith.constant 0.000000e+00 : f32
    %60 = vector.broadcast %cst_34 : f32 to vector<6x128xf32>
    %61 = tpu.concatenate %56, %59, %60 in 0 : vector<1x128xf32>, vector<1x128xf32>, vector<6x128xf32> -> vector<8x128xf32>
    %c0_35 = arith.constant 0 : index
    %c0_36 = arith.constant 0 : index
    %c0_37 = arith.constant 0 : index
    %c0_38 = arith.constant 0 : index
    %62 = vector.load %arg9[%c0_35, %c0_36, %c0_37, %c0_38] : memref<1x1x8x128xf32, #tpu.memory_space<vmem>>, vector<1x1x8x128xf32>
    %63 = vector.shape_cast %62 : vector<1x1x8x128xf32> to vector<8x128xf32>
    %64 = vector.shape_cast %61 : vector<8x128xf32> to vector<1x1x8x128xf32>
    tpu.vector_store %arg9[%c0_35, %c0_36, %c0_37, %c0_38], %64 {strides = array<i32>} : memref<1x1x8x128xf32, #tpu.memory_space<vmem>>, vector<1x1x8x128xf32>,
    return
  }
  func.func @transform_0(%arg0: i32, %arg1: i32) -> (i32, i32, i32) {
    %c0_i32 = arith.constant 0 : i32
    %c0_i32_0 = arith.constant 0 : i32
    return %arg0, %arg1, %c0_i32 : i32, i32, i32
  }
  func.func @transform_1(%arg0: i32, %arg1: i32) -> (i32, i32, i32, i32) {
    %c0_i32 = arith.constant 0 : i32
    %c0_i32_0 = arith.constant 0 : i32
    %c0_i32_1 = arith.constant 0 : i32
    return %arg0, %arg1, %c0_i32, %c0_i32_0 : i32, i32, i32, i32
  }
  func.func @transform_2(%arg0: i32, %arg1: i32) -> (i32, i32) {
    %c0_i32 = arith.constant 0 : i32
    %c0_i32_0 = arith.constant 0 : i32
    %c0_i32_1 = arith.constant 0 : i32
    return %c0_i32, %c0_i32_0 : i32, i32
  }
  func.func @transform_3(%arg0: i32, %arg1: i32) -> (i32, i32) {
    %c0_i32 = arith.constant 0 : i32
    %c0_i32_0 = arith.constant 0 : i32
    %c0_i32_1 = arith.constant 0 : i32
    return %c0_i32, %c0_i32_0 : i32, i32
  }
  func.func @transform_4(%arg0: i32, %arg1: i32) -> (i32, i32, i32) {
    %c0_i32 = arith.constant 0 : i32
    %c0_i32_0 = arith.constant 0 : i32
    %c0_i32_1 = arith.constant 0 : i32
    %c0_i32_2 = arith.constant 0 : i32
    return %c0_i32, %c0_i32_0, %c0_i32_1 : i32, i32, i32
  }
  func.func @transform_5(%arg0: i32, %arg1: i32) -> (i32, i32) {
    %c0_i32 = arith.constant 0 : i32
    %c0_i32_0 = arith.constant 0 : i32
    %c0_i32_1 = arith.constant 0 : i32
    return %c0_i32, %c0_i32_0 : i32, i32
  }
  func.func @transform_6(%arg0: i32, %arg1: i32) -> (i32, i32, i32) {
    %c0_i32 = arith.constant 0 : i32
    %c0_i32_0 = arith.constant 0 : i32
    return %arg0, %arg1, %c0_i32 : i32, i32, i32
  }
  func.func @transform_7(%arg0: i32, %arg1: i32) -> (i32, i32, i32, i32) {
    %c0_i32 = arith.constant 0 : i32
    %c0_i32_0 = arith.constant 0 : i32
    %c0_i32_1 = arith.constant 0 : i32
    return %arg0, %arg1, %c0_i32, %c0_i32_0 : i32, i32, i32, i32
  }
}

module attributes {stable_mosaic.version = 11 : i64} {
  func.func @_stage3_kernel(%arg0: i32, %arg1: i32, %arg2: memref<1x16x128xbf16, #tpu.memory_space<vmem>>, %arg3: memref<1x16x128xbf16, #tpu.memory_space<vmem>>, %arg4: memref<1x1x128xf32, #tpu.memory_space<vmem>>, %arg5: memref<1x128xf32, #tpu.memory_space<vmem>>, %arg6: memref<1x128xf32, #tpu.memory_space<vmem>>, %arg7: memref<1x128xf32, #tpu.memory_space<vmem>>, %arg8: memref<1x128xf32, #tpu.memory_space<vmem>>, %arg9: memref<1x16x128xf32, #tpu.memory_space<vmem>>) attributes {dimension_semantics = [#tpu.dimension_semantics<parallel>, #tpu.dimension_semantics<parallel>], iteration_bounds = array<i64: 2, 1>, scalar_prefetch = 0 : i64, scratch_operands = 0 : i64, tpu.core_type = #tpu.core_type<tc>, window_params = [{transform_indices = @transform_0, window_bounds = array<i64: 1, 16, 128>}, {transform_indices = @transform_1, window_bounds = array<i64: 1, 16, 128>}, {transform_indices = @transform_2, window_bounds = array<i64: 1, 1, 128>}, {pipeline_mode = #tpu.pipeline_mode<synchronous>, transform_indices = @transform_3, window_bounds = array<i64: 1, 128>}, {pipeline_mode = #tpu.pipeline_mode<synchronous>, transform_indices = @transform_4, window_bounds = array<i64: 1, 128>}, {pipeline_mode = #tpu.pipeline_mode<synchronous>, transform_indices = @transform_5, window_bounds = array<i64: 1, 128>}, {pipeline_mode = #tpu.pipeline_mode<synchronous>, transform_indices = @transform_6, window_bounds = array<i64: 1, 128>}, {transform_indices = @transform_7, window_bounds = array<i64: 1, 16, 128>}]} {
    %c0 = arith.constant 0 : index
    %c0_0 = arith.constant 0 : index
    %c0_1 = arith.constant 0 : index
    %0 = vector.load %arg2[%c0, %c0_0, %c0_1] : memref<1x16x128xbf16, #tpu.memory_space<vmem>>, vector<1x16x128xbf16>
    %1 = vector.shape_cast %0 : vector<1x16x128xbf16> to vector<16x128xbf16>
    %2 = arith.extf %1 : vector<16x128xbf16> to vector<16x128xf32>
    %c0_2 = arith.constant 0 : index
    %c0_3 = arith.constant 0 : index
    %3 = vector.load %arg5[%c0_2, %c0_3] : memref<1x128xf32, #tpu.memory_space<vmem>>, vector<1x128xf32>
    %4 = vector.broadcast %3 : vector<1x128xf32> to vector<16x128xf32>
    %5 = arith.mulf %2, %4 : vector<16x128xf32>
    %c0_4 = arith.constant 0 : index
    %c0_5 = arith.constant 0 : index
    %6 = vector.load %arg6[%c0_4, %c0_5] : memref<1x128xf32, #tpu.memory_space<vmem>>, vector<1x128xf32>
    %7 = vector.broadcast %6 : vector<1x128xf32> to vector<16x128xf32>
    %8 = arith.addf %5, %7 : vector<16x128xf32>
    %c0_6 = arith.constant 0 : index
    %c0_7 = arith.constant 0 : index
    %c0_8 = arith.constant 0 : index
    %9 = vector.load %arg3[%c0_6, %c0_7, %c0_8] : memref<1x16x128xbf16, #tpu.memory_space<vmem>>, vector<1x16x128xbf16>
    %10 = vector.shape_cast %9 : vector<1x16x128xbf16> to vector<16x128xbf16>
    %11 = arith.extf %10 : vector<16x128xbf16> to vector<16x128xf32>
    %c0_9 = arith.constant 0 : index
    %c0_10 = arith.constant 0 : index
    %12 = vector.load %arg7[%c0_9, %c0_10] : memref<1x128xf32, #tpu.memory_space<vmem>>, vector<1x128xf32>
    %13 = vector.broadcast %12 : vector<1x128xf32> to vector<16x128xf32>
    %14 = arith.mulf %11, %13 : vector<16x128xf32>
    %c0_11 = arith.constant 0 : index
    %c0_12 = arith.constant 0 : index
    %15 = vector.load %arg8[%c0_11, %c0_12] : memref<1x128xf32, #tpu.memory_space<vmem>>, vector<1x128xf32>
    %16 = vector.broadcast %15 : vector<1x128xf32> to vector<16x128xf32>
    %17 = arith.addf %14, %16 : vector<16x128xf32>
    %c0_13 = arith.constant 0 : index
    %c0_14 = arith.constant 0 : index
    %c0_15 = arith.constant 0 : index
    %18 = vector.load %arg4[%c0_13, %c0_14, %c0_15] : memref<1x1x128xf32, #tpu.memory_space<vmem>>, vector<1x1x128xf32>
    %19 = vector.shape_cast %18 : vector<1x1x128xf32> to vector<1x128xf32>
    %20 = vector.broadcast %19 : vector<1x128xf32> to vector<16x128xf32>
    %21 = arith.mulf %8, %20 : vector<16x128xf32>
    %22 = arith.addf %21, %17 : vector<16x128xf32>
    %cst = arith.constant 0.000000e+00 : f32
    %23 = vector.broadcast %cst : f32 to vector<16x128xf32>
    %24 = arith.cmpf ogt, %22, %23 : vector<16x128xf32>
    %cst_16 = arith.constant 0.000000e+00 : f32
    %25 = vector.broadcast %cst_16 : f32 to vector<16x128xf32>
    %26 = arith.minimumf %22, %25 : vector<16x128xf32>
    %27 = math.exp %26 : vector<16x128xf32>
    %cst_17 = arith.constant 1.000000e+00 : f32
    %28 = vector.broadcast %cst_17 : f32 to vector<16x128xf32>
    %29 = arith.subf %27, %28 : vector<16x128xf32>
    %30 = arith.select %24, %22, %29 : vector<16x128xi1>, vector<16x128xf32>
    %c0_18 = arith.constant 0 : index
    %c0_19 = arith.constant 0 : index
    %c0_20 = arith.constant 0 : index
    %31 = vector.load %arg9[%c0_18, %c0_19, %c0_20] : memref<1x16x128xf32, #tpu.memory_space<vmem>>, vector<1x16x128xf32>
    %32 = vector.shape_cast %31 : vector<1x16x128xf32> to vector<16x128xf32>
    %33 = vector.shape_cast %30 : vector<16x128xf32> to vector<1x16x128xf32>
    tpu.vector_store %arg9[%c0_18, %c0_19, %c0_20], %33 {strides = array<i32>} : memref<1x16x128xf32, #tpu.memory_space<vmem>>, vector<1x16x128xf32>,
    return
  }
  func.func @transform_0(%arg0: i32, %arg1: i32) -> (i32, i32, i32) {
    %c0_i32 = arith.constant 0 : i32
    %c0_i32_0 = arith.constant 0 : i32
    return %arg0, %arg1, %c0_i32 : i32, i32, i32
  }
  func.func @transform_1(%arg0: i32, %arg1: i32) -> (i32, i32, i32) {
    %c0_i32 = arith.constant 0 : i32
    %c0_i32_0 = arith.constant 0 : i32
    return %arg0, %arg1, %c0_i32 : i32, i32, i32
  }
  func.func @transform_2(%arg0: i32, %arg1: i32) -> (i32, i32, i32) {
    %c0_i32 = arith.constant 0 : i32
    %c0_i32_0 = arith.constant 0 : i32
    %c0_i32_1 = arith.constant 0 : i32
    return %arg0, %c0_i32, %c0_i32_0 : i32, i32, i32
  }
  func.func @transform_3(%arg0: i32, %arg1: i32) -> (i32, i32) {
    %c0_i32 = arith.constant 0 : i32
    %c0_i32_0 = arith.constant 0 : i32
    %c0_i32_1 = arith.constant 0 : i32
    return %c0_i32, %c0_i32_0 : i32, i32
  }
  func.func @transform_4(%arg0: i32, %arg1: i32) -> (i32, i32) {
    %c0_i32 = arith.constant 0 : i32
    %c0_i32_0 = arith.constant 0 : i32
    %c0_i32_1 = arith.constant 0 : i32
    return %c0_i32, %c0_i32_0 : i32, i32
  }
  func.func @transform_5(%arg0: i32, %arg1: i32) -> (i32, i32) {
    %c0_i32 = arith.constant 0 : i32
    %c0_i32_0 = arith.constant 0 : i32
    %c0_i32_1 = arith.constant 0 : i32
    return %c0_i32, %c0_i32_0 : i32, i32
  }
  func.func @transform_6(%arg0: i32, %arg1: i32) -> (i32, i32) {
    %c0_i32 = arith.constant 0 : i32
    %c0_i32_0 = arith.constant 0 : i32
    %c0_i32_1 = arith.constant 0 : i32
    return %c0_i32, %c0_i32_0 : i32, i32
  }
  func.func @transform_7(%arg0: i32, %arg1: i32) -> (i32, i32, i32) {
    %c0_i32 = arith.constant 0 : i32
    %c0_i32_0 = arith.constant 0 : i32
    return %arg0, %arg1, %c0_i32 : i32, i32, i32
  }
}

</mosaic_0001>

<llo_original>
// kernel: eca_basic_block.5
$region0: #{eca_basic_block.5}
  #allocation0 [shape = 'u32[]', space=smem, size = 0x4, offset = 0x4, fixed_abs, tag = 'smem constant byte address 0x4 - core index']
  #allocation1 [shape = 'u32[144,128]{1,0:T(1,128)}', space=vmem, size = 0x12000, scoped, tag = 'internal scratch']
  %s0 = inlined_call_operand.vmem [shape: bf16[2,16,128], index: 0, kind: input, shape index: {}]
  %s1 = inlined_call_operand.vmem [shape: bf16[2,16,128], index: 1, kind: input, shape index: {}]
  %s2 = inlined_call_operand.vmem [shape: f32[2,1,128], index: 2, kind: input, shape index: {}]
  %s3 = inlined_call_operand.vmem [shape: f32[1,128], index: 3, kind: input, shape index: {}]
  %s4 = inlined_call_operand.vmem [shape: f32[1,128], index: 4, kind: input, shape index: {}]
  %s5 = inlined_call_operand.vmem [shape: f32[1,128], index: 5, kind: input, shape index: {}]
  %s6 = inlined_call_operand.vmem [shape: f32[1,128], index: 6, kind: input, shape index: {}]
  %s7 = inlined_call_operand.vmem [shape: f32[2,16,128], index: 7, kind: output, shape index: {}]
  %s8 = sld [smem:[#allocation0]]
  $region61: #{eca_basic_block.5} parent=0
    _
  %s10 = ssub.s32 1, %s8
  %s11 = scalar_select 0, %s10, %s8
  loop: start=0, step=1, limit=4
  $region2: #{eca_basic_block.5} parent=0 // loop_pre_header
    _
  $region3: #{eca_basic_block.5} parent=0 // loop_header
    %s13 = sphi 0, %s17
    %p14 = scmp.ge.s32.totalorder %s13, 4
    %s20 = sphi 0, %s32
    %s21 = sphi 0, %s28
    %s22 = sphi 0, %s20
    %s23 = sphi 0, %s21
    %s24 = sphi 0, %s22
    %s25 = sphi 0, %s23
    %s37 = sphi 0, %s39
    %s40 = sphi 0, %s37
    %s41 = sphi 0, %s40
    %s57 = sphi 0, %s41
    %s65 = sphi 0, %s67
    %s68 = sphi 0, %s65
    %s69 = sphi 0, %s68
    %s85 = sphi 0, %s69
    %s91 = sphi 0, %s93
    %s94 = sphi 0, %s91
    %s95 = sphi 0, %s94
    %s111 = sphi 0, %s95
    %s115 = sphi 0, %s115
    %s117 = sphi 0, %s115
    %s118 = sphi 0, %s117
    %s132 = sphi 0, %s118
    %s136 = sphi 0, %s136
    %s138 = sphi 0, %s136
    %s139 = sphi 0, %s138
    %s153 = sphi 0, %s139
    %s157 = sphi 0, %s157
    %s159 = sphi 0, %s157
    %s160 = sphi 0, %s159
    %s174 = sphi 0, %s160
    %s178 = sphi 0, %s178
    %s180 = sphi 0, %s178
    %s181 = sphi 0, %s180
    %s195 = sphi 0, %s181
    %s203 = sphi 0, %s205
    %s206 = sphi 0, %s203
    %s207 = sphi 0, %s206
    %s223 = sphi 0, %s207
  $region4: #{eca_basic_block.5} parent=0 // loop_header_branch
    %16 = sbr.rel (%p14) target = $region8
  $region5: #{eca_basic_block.5} parent=0 // loop_body
    %s18 = ssub.s32 %s13, 1
    %s19 = ssub.s32 %s13, 2
    %s26 = sadd.s32 1, %s21
    %p27 = scmp.ge.s32.totalorder %s26, 1
    %s28 = scalar_select %p27, 0, %s26
    %s29 = sadd.s32 1, %s20
    %s30 = scalar_select %p27, %s29, %s20
    %p31 = scmp.ge.s32.totalorder %s30, 2
    %s32 = scalar_select %p31, 0, %s30
    %s33 = ssub.s32 %s20, %s32
    %s34 = ssub.s32 %s21, %s28
    %s35 = sor.u32 %s33, %s34
    %p36 = scmp.eq.s32.totalorder %s35, 0
    %s38 = sadd.s32 %s37, 1
    %s39 = scalar_select %p36, %s37, %s38
    %p42 = pneg %p36
    %p43 = scmp.eq.s32.totalorder %s13, 1
    %p44 = por %p42, %p43
    %p45 = scmp.ne.s32.totalorder %s37, %s40
    %p46 = scmp.eq.s32.totalorder %s13, 0
    %p47 = por %p45, %p46
    %p48 = scmp.ne.s32.totalorder %s37, %s40
    %p49 = scmp.eq.s32.totalorder %s18, 1
    %p50 = por %p48, %p49
    %p51 = scmp.ne.s32.totalorder %s40, %s41
    %p52 = scmp.eq.s32.totalorder %s18, 0
    %p53 = por %p51, %p52
    %p54 = scmp.ne.s32.totalorder %s40, %s41
    %p55 = scmp.eq.s32.totalorder %s19, 1
    %p56 = por %p54, %p55
    %p58 = scmp.ne.s32.totalorder %s41, %s57
    %p59 = scmp.eq.s32.totalorder %s19, 0
    %p60 = por %p58, %p59
    %s61 = ssub.s32 %s20, %s32
    %s62 = ssub.s32 %s21, %s28
    %s63 = sor.u32 %s61, %s62
    %p64 = scmp.eq.s32.totalorder %s63, 0
    %s66 = sadd.s32 %s65, 1
    %s67 = scalar_select %p64, %s65, %s66
    %p70 = pneg %p64
    %p71 = scmp.eq.s32.totalorder %s13, 1
    %p72 = por %p70, %p71
    %p73 = scmp.ne.s32.totalorder %s65, %s68
    %p74 = scmp.eq.s32.totalorder %s13, 0
    %p75 = por %p73, %p74
    %p76 = scmp.ne.s32.totalorder %s65, %s68
    %p77 = scmp.eq.s32.totalorder %s18, 1
    %p78 = por %p76, %p77
    %p79 = scmp.ne.s32.totalorder %s68, %s69
    %p80 = scmp.eq.s32.totalorder %s18, 0
    %p81 = por %p79, %p80
    %p82 = scmp.ne.s32.totalorder %s68, %s69
    %p83 = scmp.eq.s32.totalorder %s19, 1
    %p84 = por %p82, %p83
    %p86 = scmp.ne.s32.totalorder %s69, %s85
    %p87 = scmp.eq.s32.totalorder %s19, 0
    %p88 = por %p86, %p87
    %s89 = ssub.s32 %s20, %s32
    %p90 = scmp.eq.s32.totalorder %s89, 0
    %s92 = sadd.s32 %s91, 1
    %s93 = scalar_select %p90, %s91, %s92
    %p96 = pneg %p90
    %p97 = scmp.eq.s32.totalorder %s13, 1
    %p98 = por %p96, %p97
    %p99 = scmp.ne.s32.totalorder %s91, %s94
    %p100 = scmp.eq.s32.totalorder %s13, 0
    %p101 = por %p99, %p100
    %p102 = scmp.ne.s32.totalorder %s91, %s94
    %p103 = scmp.eq.s32.totalorder %s18, 1
    %p104 = por %p102, %p103
    %p105 = scmp.ne.s32.totalorder %s94, %s95
    %p106 = scmp.eq.s32.totalorder %s18, 0
    %p107 = por %p105, %p106
    %p108 = scmp.ne.s32.totalorder %s94, %s95
    %p109 = scmp.eq.s32.totalorder %s19, 1
    %p110 = por %p108, %p109
    %p112 = scmp.ne.s32.totalorder %s95, %s111
    %p113 = scmp.eq.s32.totalorder %s19, 0
    %p114 = por %p112, %p113
    %s116 = sadd.s32 %s115, 1
    %p119 = scmp.eq.s32.totalorder %s13, 1
    %p120 = scmp.ne.s32.totalorder %s115, %s117
    %p121 = scmp.eq.s32.totalorder %s13, 0
    %p122 = por %p120, %p121
    %p123 = scmp.ne.s32.totalorder %s115, %s117
    %p124 = scmp.eq.s32.totalorder %s18, 1
    %p125 = por %p123, %p124
    %p126 = scmp.ne.s32.totalorder %s117, %s118
    %p127 = scmp.eq.s32.totalorder %s18, 0
    %p128 = por %p126, %p127
    %p129 = scmp.ne.s32.totalorder %s117, %s118
    %p130 = scmp.eq.s32.totalorder %s19, 1
    %p131 = por %p129, %p130
    %p133 = scmp.ne.s32.totalorder %s118, %s132
    %p134 = scmp.eq.s32.totalorder %s19, 0
    %p135 = por %p133, %p134
    %s137 = sadd.s32 %s136, 1
    %p140 = scmp.eq.s32.totalorder %s13, 1
    %p141 = scmp.ne.s32.totalorder %s136, %s138
    %p142 = scmp.eq.s32.totalorder %s13, 0
    %p143 = por %p141, %p142
    %p144 = scmp.ne.s32.totalorder %s136, %s138
    %p145 = scmp.eq.s32.totalorder %s18, 1
    %p146 = por %p144, %p145
    %p147 = scmp.ne.s32.totalorder %s138, %s139
    %p148 = scmp.eq.s32.totalorder %s18, 0
    %p149 = por %p147, %p148
    %p150 = scmp.ne.s32.totalorder %s138, %s139
    %p151 = scmp.eq.s32.totalorder %s19, 1
    %p152 = por %p150, %p151
    %p154 = scmp.ne.s32.totalorder %s139, %s153
    %p155 = scmp.eq.s32.totalorder %s19, 0
    %p156 = por %p154, %p155
    %s158 = sadd.s32 %s157, 1
    %p161 = scmp.eq.s32.totalorder %s13, 1
    %p162 = scmp.ne.s32.totalorder %s157, %s159
    %p163 = scmp.eq.s32.totalorder %s13, 0
    %p164 = por %p162, %p163
    %p165 = scmp.ne.s32.totalorder %s157, %s159
    %p166 = scmp.eq.s32.totalorder %s18, 1
    %p167 = por %p165, %p166
    %p168 = scmp.ne.s32.totalorder %s159, %s160
    %p169 = scmp.eq.s32.totalorder %s18, 0
    %p170 = por %p168, %p169
    %p171 = scmp.ne.s32.totalorder %s159, %s160
    %p172 = scmp.eq.s32.totalorder %s19, 1
    %p173 = por %p171, %p172
    %p175 = scmp.ne.s32.totalorder %s160, %s174
    %p176 = scmp.eq.s32.totalorder %s19, 0
    %p177 = por %p175, %p176
    %s179 = sadd.s32 %s178, 1
    %p182 = scmp.eq.s32.totalorder %s13, 1
    %p183 = scmp.ne.s32.totalorder %s178, %s180
    %p184 = scmp.eq.s32.totalorder %s13, 0
    %p185 = por %p183, %p184
    %p186 = scmp.ne.s32.totalorder %s178, %s180
    %p187 = scmp.eq.s32.totalorder %s18, 1
    %p188 = por %p186, %p187
    %p189 = scmp.ne.s32.totalorder %s180, %s181
    %p190 = scmp.eq.s32.totalorder %s18, 0
    %p191 = por %p189, %p190
    %p192 = scmp.ne.s32.totalorder %s180, %s181
    %p193 = scmp.eq.s32.totalorder %s19, 1
    %p194 = por %p192, %p193
    %p196 = scmp.ne.s32.totalorder %s181, %s195
    %p197 = scmp.eq.s32.totalorder %s19, 0
    %p198 = por %p196, %p197
    %s199 = ssub.s32 %s20, %s32
    %s200 = ssub.s32 %s21, %s28
    %s201 = sor.u32 %s199, %s200
    %p202 = scmp.eq.s32.totalorder %s201, 0
    %s204 = sadd.s32 %s203, 1
    %s205 = scalar_select %p202, %s203, %s204
    %p208 = pneg %p202
    %p209 = scmp.eq.s32.totalorder %s13, 1
    %p210 = por %p208, %p209
    %p211 = scmp.ne.s32.totalorder %s203, %s206
    %p212 = scmp.eq.s32.totalorder %s13, 0
    %p213 = por %p211, %p212
    %p214 = scmp.ne.s32.totalorder %s203, %s206
    %p215 = scmp.eq.s32.totalorder %s18, 1
    %p216 = por %p214, %p215
    %p217 = scmp.ne.s32.totalorder %s206, %s207
    %p218 = scmp.eq.s32.totalorder %s18, 0
    %p219 = por %p217, %p218
    %p220 = scmp.ne.s32.totalorder %s206, %s207
    %p221 = scmp.eq.s32.totalorder %s19, 1
    %p222 = por %p220, %p221
    %p224 = scmp.ne.s32.totalorder %s207, %s223
    %p225 = scmp.eq.s32.totalorder %s19, 0
    %p226 = por %p224, %p225
    %p227 = scmp.le.s32.totalorder 1, %s13
    %p228 = scmp.lt.s32.totalorder %s13, 3
    %p229 = pnand %p227, %p228
    %p230 = pneg %p229
    // Predicated region
    $region9: #{eca_basic_block.5} parent=5 // pred_check
      _
    $region10: #{eca_basic_block.5} parent=5 // pred_check_branch
      %232 = sbr.rel (%p229) target = $region12
    $region11: #{eca_basic_block.5} parent=5 // pred_region
      %s233 = ssub.s32 %s13, 1
      // Predicated region
      $region13: #{eca_basic_block.5} parent=11 // pred_check
        %p234 = pneg %p128
      $region14: #{eca_basic_block.5} parent=11 // pred_check_branch
        %236 = sbr.rel (%p234) target = $region16
      $region15: #{eca_basic_block.5} parent=11 // pred_region
        _
      $region16: #{eca_basic_block.5} parent=11 // pred_fallthru
        _
      // Predicated region
      $region17: #{eca_basic_block.5} parent=11 // pred_check
        %p237 = pneg %p149
      $region18: #{eca_basic_block.5} parent=11 // pred_check_branch
        %239 = sbr.rel (%p237) target = $region20
      $region19: #{eca_basic_block.5} parent=11 // pred_region
        _
      $region20: #{eca_basic_block.5} parent=11 // pred_fallthru
        _
      // Predicated region
      $region21: #{eca_basic_block.5} parent=11 // pred_check
        %p240 = pneg %p170
      $region22: #{eca_basic_block.5} parent=11 // pred_check_branch
        %242 = sbr.rel (%p240) target = $region24
      $region23: #{eca_basic_block.5} parent=11 // pred_region
        _
      $region24: #{eca_basic_block.5} parent=11 // pred_fallthru
        _
      // Predicated region
      $region25: #{eca_basic_block.5} parent=11 // pred_check
        %p243 = pneg %p191
      $region26: #{eca_basic_block.5} parent=11 // pred_check_branch
        %245 = sbr.rel (%p243) target = $region28
      $region27: #{eca_basic_block.5} parent=11 // pred_region
        _
      $region28: #{eca_basic_block.5} parent=11 // pred_fallthru
        _
    $region12: #{eca_basic_block.5} parent=5 // pred_fallthru
      _
    %p246 = scmp.lt.s32.totalorder %s13, 2
    // Predicated region
    $region29: #{eca_basic_block.5} parent=5 // pred_check
      %p247 = pneg %p246
    $region30: #{eca_basic_block.5} parent=5 // pred_check_branch
      %249 = sbr.rel (%p247) target = $region32
    $region31: #{eca_basic_block.5} parent=5 // pred_region
      // Predicated region
      $region33: #{eca_basic_block.5} parent=31 // pred_check
        %p250 = pneg %p47
      $region34: #{eca_basic_block.5} parent=31 // pred_check_branch
        %252 = sbr.rel (%p250) target = $region36
      $region35: #{eca_basic_block.5} parent=31 // pred_region
        %s253 = smul.u32 2, %s21
        %p254 = scmp.lt.s32.totalorder %s20, 1
        %s255 = scalar_select %p254, %s20, 1
        %p256 = scmp.lt.s32.totalorder %s253, 1
        %s257 = scalar_select %p256, %s253, 1
        %s258 = smul.addr %s255, 2
        %s259 = sadd.s32 %s257, %s258
        %s260 = smul.addr %s259, 4
        %s261 = scalar_lea.vmem %s0, %s260
        %s262 = smul.u32 2, %s21
      $region36: #{eca_basic_block.5} parent=31 // pred_fallthru
        _
      // Predicated region
      $region37: #{eca_basic_block.5} parent=31 // pred_check
        %p263 = pneg %p75
      $region38: #{eca_basic_block.5} parent=31 // pred_check_branch
        %265 = sbr.rel (%p263) target = $region40
      $region39: #{eca_basic_block.5} parent=31 // pred_region
        %s266 = smul.u32 2, %s21
        %p267 = scmp.lt.s32.totalorder %s20, 1
        %s268 = scalar_select %p267, %s20, 1
        %p269 = scmp.lt.s32.totalorder %s266, 1
        %s270 = scalar_select %p269, %s266, 1
        %s271 = smul.addr %s268, 2
        %s272 = sadd.s32 %s270, %s271
        %s273 = smul.addr %s272, 4
        %s274 = scalar_lea.vmem %s1, %s273
        %s275 = smul.u32 2, %s21
      $region40: #{eca_basic_block.5} parent=31 // pred_fallthru
        _
      // Predicated region
      $region41: #{eca_basic_block.5} parent=31 // pred_check
        %p276 = pneg %p101
      $region42: #{eca_basic_block.5} parent=31 // pred_check_branch
        %278 = sbr.rel (%p276) target = $region44
      $region43: #{eca_basic_block.5} parent=31 // pred_region
        %p279 = scmp.lt.s32.totalorder %s20, 1
        %s280 = scalar_select %p279, %s20, 1
        %s281 = scalar_lea.vmem %s2, %s280
      $region44: #{eca_basic_block.5} parent=31 // pred_fallthru
        _
    $region32: #{eca_basic_block.5} parent=5 // pred_fallthru
      _
    %p282 = scmp.le.s32.totalorder 1, %s13
    %p283 = scmp.lt.s32.totalorder %s13, 3
    %p284 = pnand %p282, %p283
    %p285 = pneg %p284
    // Predicated region
    $region45: #{eca_basic_block.5} parent=5 // pred_check
      _
    $region46: #{eca_basic_block.5} parent=5 // pred_check_branch
      %287 = sbr.rel (%p284) target = $region48
    $region47: #{eca_basic_block.5} parent=5 // pred_region
      %s288 = ssub.s32 %s13, 1
      %s289 = smul.u32 2, %s23
      %p290 = scmp.lt.s32.totalorder %s22, 1
      %s291 = scalar_select %p290, %s22, 1
      %p292 = scmp.lt.s32.totalorder %s289, 1
      %s293 = scalar_select %p292, %s289, 1
      %s294 = smul.addr %s291, 2
      %s295 = sadd.s32 %s293, %s294
      %s296 = smul.addr %s295, 4
      %s297 = scalar_lea.vmem %s0, %s296
      %p298 = pneg %p53
      %p299 = pneg %p50
      %s300 = smul.u32 2, %s23
      %p301 = scmp.lt.s32.totalorder %s22, 1
      %s302 = scalar_select %p301, %s22, 1
      %p303 = scmp.lt.s32.totalorder %s300, 1
      %s304 = scalar_select %p303, %s300, 1
      %s305 = smul.addr %s302, 2
      %s306 = sadd.s32 %s304, %s305
      %s307 = smul.addr %s306, 4
      %s308 = scalar_lea.vmem %s1, %s307
      %p309 = pneg %p81
      %p310 = pneg %p78
      %p311 = scmp.lt.s32.totalorder %s22, 1
      %s312 = scalar_select %p311, %s22, 1
      %s313 = scalar_lea.vmem %s2, %s312
      %p314 = pneg %p107
      %p315 = pneg %p104
      %p316 = pneg %p128
      %p317 = pneg %p125
      %p318 = pneg %p149
      %p319 = pneg %p146
      %p320 = pneg %p170
      %p321 = pneg %p167
      %p322 = pneg %p191
      %p323 = pneg %p188
      %p324 = pneg %p219
      %p325 = pneg %p216
      %s326 = smul.u32 2, %s23
      %p327 = scmp.lt.s32.totalorder %s22, 1
      %s328 = scalar_select %p327, %s22, 1
      %p329 = scmp.lt.s32.totalorder %s326, 1
      %s330 = scalar_select %p329, %s326, 1
      %s331 = smul.addr %s328, 2
      %s332 = sadd.s32 %s330, %s331
      %s333 = smul.addr %s332, 8
      %s334 = scalar_lea.vmem %s7, %s333
      %s335 = smul.u32 2, %s23
      %p336 = scmp.lt.s32.totalorder %s22, 1
      %s337 = scalar_select %p336, %s22, 1
      %p338 = scmp.lt.s32.totalorder %s335, 1
      %s339 = scalar_select %p338, %s335, 1
      %s340 = smul.addr %s337, 2
      %s341 = sadd.s32 %s339, %s340
      %s342 = smul.addr %s341, 4
      %s343 = scalar_lea.vmem %s0, %s342
      %s344 = smul.u32 2, %s23
      %s345 = smul.u32 2, %s23
      %p346 = scmp.lt.s32.totalorder %s22, 1
      %s347 = scalar_select %p346, %s22, 1
      %p348 = scmp.lt.s32.totalorder %s345, 1
      %s349 = scalar_select %p348, %s345, 1
      %s350 = smul.addr %s347, 2
      %s351 = sadd.s32 %s349, %s350
      %s352 = smul.addr %s351, 4
      %s353 = scalar_lea.vmem %s1, %s352
      %s354 = smul.u32 2, %s23
      %p355 = scmp.lt.s32.totalorder %s22, 1
      %s356 = scalar_select %p355, %s22, 1
      %s357 = scalar_lea.vmem %s2, %s356
      %s358 = smul.u32 2, %s23
      %p359 = scmp.lt.s32.totalorder %s22, 1
      %s360 = scalar_select %p359, %s22, 1
      %p361 = scmp.lt.s32.totalorder %s358, 1
      %s362 = scalar_select %p361, %s358, 1
      %s363 = smul.addr %s360, 2
      %s364 = sadd.s32 %s362, %s363
      %s365 = smul.addr %s364, 8
      %s366 = scalar_lea.vmem %s7, %s365
      %s367 = smul.u32 2, %s23
      %v368 = vld [vmem:[%s343] sm:$0xf]
      %v369 = vld [vmem:[%s343 + $0x4] sm:$0xf]
      %v370 = vunpack.c.l.bf16 %v368
      %v371 = vunpack.c.l.bf16 %v369
      %v372 = vld [vmem:[%s3] sm:$0x1]
      %v374 = vlaneseq
      %v375 = vshrl.u32 %v374, 7
      %v376 = vsub.s32 0, %v375
      %v377 = vrot.slane %v372, %v376
      %v379 = vmul.f32 %v370, %v377
      %v380 = vmul.f32 %v371, %v377
      %v381 = vld [vmem:[%s4] sm:$0x1]
      %v383 = vlaneseq
      %v384 = vshrl.u32 %v383, 7
      %v385 = vsub.s32 0, %v384
      %v386 = vrot.slane %v381, %v385
      %v388 = vadd.f32 %v379, %v386
      %v389 = vadd.f32 %v380, %v386
      %v390 = vld [vmem:[%s353] sm:$0xf]
      %v391 = vld [vmem:[%s353 + $0x4] sm:$0xf]
      %v392 = vunpack.c.l.bf16 %v390
      %v393 = vunpack.c.l.bf16 %v391
      %v394 = vld [vmem:[%s5] sm:$0x1]
      %v396 = vlaneseq
      %v397 = vshrl.u32 %v396, 7
      %v398 = vsub.s32 0, %v397
      %v399 = vrot.slane %v394, %v398
      %v401 = vmul.f32 %v392, %v399
      %v402 = vmul.f32 %v393, %v399
      %v403 = vld [vmem:[%s6] sm:$0x1]
      %v405 = vlaneseq
      %v406 = vshrl.u32 %v405, 7
      %v407 = vsub.s32 0, %v406
      %v408 = vrot.slane %v403, %v407
      %v410 = vadd.f32 %v401, %v408
      %v411 = vadd.f32 %v402, %v408
      %v412 = vld [vmem:[%s357] sm:$0x1]
      %v414 = vlaneseq
      %v415 = vshrl.u32 %v414, 7
      %v416 = vsub.s32 0, %v415
      %v417 = vrot.slane %v412, %v416
      %v419 = vmul.f32 %v388, %v417
      %v420 = vmul.f32 %v389, %v417
      %v421 = vadd.f32 %v419, %v410
      %v422 = vadd.f32 %v420, %v411
      %vm423 = vcmp.gt.f32.partialorder %v421, 0.0
      %vm424 = vcmp.gt.f32.partialorder %v422, 0.0
      %v425 = vmin.f32 %v421, 0.0
      %v426 = vmin.f32 %v422, 0.0
      %v427 = vmul.f32 %v425, 1.442695
      %v428 = vpow.pop %v427
      %v429 = vmul.f32 %v426, 1.442695
      %v430 = vpow.pop %v429
      %v431 = vsub.f32 %v428, 1.0
      %v432 = vsub.f32 %v430, 1.0
      %v433 = vsel %vm423, %v421, %v431
      %v434 = vsel %vm424, %v422, %v432
      %435 = vst [vmem:[%s366] sm:$0xff] %v433
      %436 = vst [vmem:[%s366 + $0x8] sm:$0xff] %v434
      %s437 = smul.u32 2, %s23
      %p438 = scmp.lt.s32.totalorder %s22, 1
      %s439 = scalar_select %p438, %s22, 1
      %p440 = scmp.lt.s32.totalorder %s437, 1
      %s441 = scalar_select %p440, %s437, 1
      %s442 = smul.addr %s439, 2
      %s443 = sadd.s32 %s441, %s442
      %s444 = smul.addr %s443, 8
      %s445 = scalar_lea.vmem %s7, %s444
      // Predicated region
      $region49: #{eca_basic_block.5} parent=47 // pred_check
        %p446 = pneg %p216
      $region50: #{eca_basic_block.5} parent=47 // pred_check_branch
        %448 = sbr.rel (%p446) target = $region52
      $region51: #{eca_basic_block.5} parent=47 // pred_region
        %s449 = smul.u32 2, %s23
      $region52: #{eca_basic_block.5} parent=47 // pred_fallthru
        _
    $region48: #{eca_basic_block.5} parent=5 // pred_fallthru
      _
    %p450 = scmp.le.s32.totalorder 2, %s13
    // Predicated region
    $region53: #{eca_basic_block.5} parent=5 // pred_check
      %p451 = pneg %p450
    $region54: #{eca_basic_block.5} parent=5 // pred_check_branch
      %453 = sbr.rel (%p451) target = $region56
    $region55: #{eca_basic_block.5} parent=5 // pred_region
      %s454 = ssub.s32 %s13, 2
      // Predicated region
      $region57: #{eca_basic_block.5} parent=55 // pred_check
        %p455 = pneg %p222
      $region58: #{eca_basic_block.5} parent=55 // pred_check_branch
        %457 = sbr.rel (%p455) target = $region60
      $region59: #{eca_basic_block.5} parent=55 // pred_region
        %s458 = smul.u32 2, %s25
        %p459 = scmp.lt.s32.totalorder %s24, 1
        %s460 = scalar_select %p459, %s24, 1
        %p461 = scmp.lt.s32.totalorder %s458, 1
        %s462 = scalar_select %p461, %s458, 1
        %s463 = smul.addr %s460, 2
        %s464 = sadd.s32 %s462, %s463
        %s465 = smul.addr %s464, 8
        %s466 = scalar_lea.vmem %s7, %s465
      $region60: #{eca_basic_block.5} parent=55 // pred_fallthru
        _
    $region56: #{eca_basic_block.5} parent=5 // pred_fallthru
      _
  $region6: #{eca_basic_block.5} parent=0 // loop_footer
    %s17 = sadd.s32 1, %s13
  $region7: #{eca_basic_block.5} parent=0 // loop_footer_branch
    %12 = sbr.rel target = $region3
  $region8: #{eca_basic_block.5} parent=0 // loop_exit
    _

// kernel: eca_basic_block.4
$region0: #{eca_basic_block.4}
  #allocation0 [shape = 'u32[]', space=smem, size = 0x4, offset = 0x4, fixed_abs, tag = 'smem constant byte address 0x4 - core index']
  #allocation1 [shape = 'u32[144,128]{1,0:T(1,128)}', space=vmem, size = 0x12000, scoped, tag = 'internal scratch']
  %s0 = inlined_call_operand.vmem [shape: bf16[2,16,128], index: 0, kind: input, shape index: {}]
  %s1 = inlined_call_operand.vmem [shape: f32[2,1,2,128], index: 1, kind: input, shape index: {}]
  %s2 = inlined_call_operand.vmem [shape: f32[1,128], index: 2, kind: input, shape index: {}]
  %s3 = inlined_call_operand.vmem [shape: f32[1,128], index: 3, kind: input, shape index: {}]
  %s4 = inlined_call_operand.vmem [shape: bf16[3,128,128], index: 4, kind: input, shape index: {}]
  %s5 = inlined_call_operand.vmem [shape: f32[1,128], index: 5, kind: input, shape index: {}]
  %s6 = inlined_call_operand.vmem [shape: bf16[2,16,128], index: 6, kind: output, shape index: {0}]
  %s7 = inlined_call_operand.vmem [shape: f32[2,1,8,128], index: 7, kind: output, shape index: {1}]
  %8 = xla_tuple %s6, %s7
  %s9 = sld [smem:[#allocation0]]
  $region65: #{eca_basic_block.4} parent=0
    _
  %s11 = ssub.s32 1, %s9
  %s12 = scalar_select 0, %s11, %s9
  loop: start=0, step=1, limit=4
  $region2: #{eca_basic_block.4} parent=0 // loop_pre_header
    _
  $region3: #{eca_basic_block.4} parent=0 // loop_header
    %s14 = sphi 0, %s18
    %p15 = scmp.ge.s32.totalorder %s14, 4
    %s21 = sphi 0, %s33
    %s22 = sphi 0, %s29
    %s23 = sphi 0, %s21
    %s24 = sphi 0, %s22
    %s25 = sphi 0, %s23
    %s26 = sphi 0, %s24
    %s38 = sphi 0, %s40
    %s41 = sphi 0, %s38
    %s42 = sphi 0, %s41
    %s58 = sphi 0, %s42
    %s66 = sphi 0, %s68
    %s69 = sphi 0, %s66
    %s70 = sphi 0, %s69
    %s86 = sphi 0, %s70
    %s90 = sphi 0, %s90
    %s92 = sphi 0, %s90
    %s93 = sphi 0, %s92
    %s107 = sphi 0, %s93
    %s111 = sphi 0, %s111
    %s113 = sphi 0, %s111
    %s114 = sphi 0, %s113
    %s128 = sphi 0, %s114
    %s132 = sphi 0, %s132
    %s134 = sphi 0, %s132
    %s135 = sphi 0, %s134
    %s149 = sphi 0, %s135
    %s153 = sphi 0, %s153
    %s155 = sphi 0, %s153
    %s156 = sphi 0, %s155
    %s170 = sphi 0, %s156
    %s178 = sphi 0, %s180
    %s181 = sphi 0, %s178
    %s182 = sphi 0, %s181
    %s198 = sphi 0, %s182
    %s206 = sphi 0, %s208
    %s209 = sphi 0, %s206
    %s210 = sphi 0, %s209
    %s226 = sphi 0, %s210
  $region4: #{eca_basic_block.4} parent=0 // loop_header_branch
    %17 = sbr.rel (%p15) target = $region8
  $region5: #{eca_basic_block.4} parent=0 // loop_body
    %s19 = ssub.s32 %s14, 1
    %s20 = ssub.s32 %s14, 2
    %s27 = sadd.s32 1, %s22
    %p28 = scmp.ge.s32.totalorder %s27, 1
    %s29 = scalar_select %p28, 0, %s27
    %s30 = sadd.s32 1, %s21
    %s31 = scalar_select %p28, %s30, %s21
    %p32 = scmp.ge.s32.totalorder %s31, 2
    %s33 = scalar_select %p32, 0, %s31
    %s34 = ssub.s32 %s21, %s33
    %s35 = ssub.s32 %s22, %s29
    %s36 = sor.u32 %s34, %s35
    %p37 = scmp.eq.s32.totalorder %s36, 0
    %s39 = sadd.s32 %s38, 1
    %s40 = scalar_select %p37, %s38, %s39
    %p43 = pneg %p37
    %p44 = scmp.eq.s32.totalorder %s14, 1
    %p45 = por %p43, %p44
    %p46 = scmp.ne.s32.totalorder %s38, %s41
    %p47 = scmp.eq.s32.totalorder %s14, 0
    %p48 = por %p46, %p47
    %p49 = scmp.ne.s32.totalorder %s38, %s41
    %p50 = scmp.eq.s32.totalorder %s19, 1
    %p51 = por %p49, %p50
    %p52 = scmp.ne.s32.totalorder %s41, %s42
    %p53 = scmp.eq.s32.totalorder %s19, 0
    %p54 = por %p52, %p53
    %p55 = scmp.ne.s32.totalorder %s41, %s42
    %p56 = scmp.eq.s32.totalorder %s20, 1
    %p57 = por %p55, %p56
    %p59 = scmp.ne.s32.totalorder %s42, %s58
    %p60 = scmp.eq.s32.totalorder %s20, 0
    %p61 = por %p59, %p60
    %s62 = ssub.s32 %s21, %s33
    %s63 = ssub.s32 %s22, %s29
    %s64 = sor.u32 %s62, %s63
    %p65 = scmp.eq.s32.totalorder %s64, 0
    %s67 = sadd.s32 %s66, 1
    %s68 = scalar_select %p65, %s66, %s67
    %p71 = pneg %p65
    %p72 = scmp.eq.s32.totalorder %s14, 1
    %p73 = por %p71, %p72
    %p74 = scmp.ne.s32.totalorder %s66, %s69
    %p75 = scmp.eq.s32.totalorder %s14, 0
    %p76 = por %p74, %p75
    %p77 = scmp.ne.s32.totalorder %s66, %s69
    %p78 = scmp.eq.s32.totalorder %s19, 1
    %p79 = por %p77, %p78
    %p80 = scmp.ne.s32.totalorder %s69, %s70
    %p81 = scmp.eq.s32.totalorder %s19, 0
    %p82 = por %p80, %p81
    %p83 = scmp.ne.s32.totalorder %s69, %s70
    %p84 = scmp.eq.s32.totalorder %s20, 1
    %p85 = por %p83, %p84
    %p87 = scmp.ne.s32.totalorder %s70, %s86
    %p88 = scmp.eq.s32.totalorder %s20, 0
    %p89 = por %p87, %p88
    %s91 = sadd.s32 %s90, 1
    %p94 = scmp.eq.s32.totalorder %s14, 1
    %p95 = scmp.ne.s32.totalorder %s90, %s92
    %p96 = scmp.eq.s32.totalorder %s14, 0
    %p97 = por %p95, %p96
    %p98 = scmp.ne.s32.totalorder %s90, %s92
    %p99 = scmp.eq.s32.totalorder %s19, 1
    %p100 = por %p98, %p99
    %p101 = scmp.ne.s32.totalorder %s92, %s93
    %p102 = scmp.eq.s32.totalorder %s19, 0
    %p103 = por %p101, %p102
    %p104 = scmp.ne.s32.totalorder %s92, %s93
    %p105 = scmp.eq.s32.totalorder %s20, 1
    %p106 = por %p104, %p105
    %p108 = scmp.ne.s32.totalorder %s93, %s107
    %p109 = scmp.eq.s32.totalorder %s20, 0
    %p110 = por %p108, %p109
    %s112 = sadd.s32 %s111, 1
    %p115 = scmp.eq.s32.totalorder %s14, 1
    %p116 = scmp.ne.s32.totalorder %s111, %s113
    %p117 = scmp.eq.s32.totalorder %s14, 0
    %p118 = por %p116, %p117
    %p119 = scmp.ne.s32.totalorder %s111, %s113
    %p120 = scmp.eq.s32.totalorder %s19, 1
    %p121 = por %p119, %p120
    %p122 = scmp.ne.s32.totalorder %s113, %s114
    %p123 = scmp.eq.s32.totalorder %s19, 0
    %p124 = por %p122, %p123
    %p125 = scmp.ne.s32.totalorder %s113, %s114
    %p126 = scmp.eq.s32.totalorder %s20, 1
    %p127 = por %p125, %p126
    %p129 = scmp.ne.s32.totalorder %s114, %s128
    %p130 = scmp.eq.s32.totalorder %s20, 0
    %p131 = por %p129, %p130
    %s133 = sadd.s32 %s132, 1
    %p136 = scmp.eq.s32.totalorder %s14, 1
    %p137 = scmp.ne.s32.totalorder %s132, %s134
    %p138 = scmp.eq.s32.totalorder %s14, 0
    %p139 = por %p137, %p138
    %p140 = scmp.ne.s32.totalorder %s132, %s134
    %p141 = scmp.eq.s32.totalorder %s19, 1
    %p142 = por %p140, %p141
    %p143 = scmp.ne.s32.totalorder %s134, %s135
    %p144 = scmp.eq.s32.totalorder %s19, 0
    %p145 = por %p143, %p144
    %p146 = scmp.ne.s32.totalorder %s134, %s135
    %p147 = scmp.eq.s32.totalorder %s20, 1
    %p148 = por %p146, %p147
    %p150 = scmp.ne.s32.totalorder %s135, %s149
    %p151 = scmp.eq.s32.totalorder %s20, 0
    %p152 = por %p150, %p151
    %s154 = sadd.s32 %s153, 1
    %p157 = scmp.eq.s32.totalorder %s14, 1
    %p158 = scmp.ne.s32.totalorder %s153, %s155
    %p159 = scmp.eq.s32.totalorder %s14, 0
    %p160 = por %p158, %p159
    %p161 = scmp.ne.s32.totalorder %s153, %s155
    %p162 = scmp.eq.s32.totalorder %s19, 1
    %p163 = por %p161, %p162
    %p164 = scmp.ne.s32.totalorder %s155, %s156
    %p165 = scmp.eq.s32.totalorder %s19, 0
    %p166 = por %p164, %p165
    %p167 = scmp.ne.s32.totalorder %s155, %s156
    %p168 = scmp.eq.s32.totalorder %s20, 1
    %p169 = por %p167, %p168
    %p171 = scmp.ne.s32.totalorder %s156, %s170
    %p172 = scmp.eq.s32.totalorder %s20, 0
    %p173 = por %p171, %p172
    %s174 = ssub.s32 %s21, %s33
    %s175 = ssub.s32 %s22, %s29
    %s176 = sor.u32 %s174, %s175
    %p177 = scmp.eq.s32.totalorder %s176, 0
    %s179 = sadd.s32 %s178, 1
    %s180 = scalar_select %p177, %s178, %s179
    %p183 = pneg %p177
    %p184 = scmp.eq.s32.totalorder %s14, 1
    %p185 = por %p183, %p184
    %p186 = scmp.ne.s32.totalorder %s178, %s181
    %p187 = scmp.eq.s32.totalorder %s14, 0
    %p188 = por %p186, %p187
    %p189 = scmp.ne.s32.totalorder %s178, %s181
    %p190 = scmp.eq.s32.totalorder %s19, 1
    %p191 = por %p189, %p190
    %p192 = scmp.ne.s32.totalorder %s181, %s182
    %p193 = scmp.eq.s32.totalorder %s19, 0
    %p194 = por %p192, %p193
    %p195 = scmp.ne.s32.totalorder %s181, %s182
    %p196 = scmp.eq.s32.totalorder %s20, 1
    %p197 = por %p195, %p196
    %p199 = scmp.ne.s32.totalorder %s182, %s198
    %p200 = scmp.eq.s32.totalorder %s20, 0
    %p201 = por %p199, %p200
    %s202 = ssub.s32 %s21, %s33
    %s203 = ssub.s32 %s22, %s29
    %s204 = sor.u32 %s202, %s203
    %p205 = scmp.eq.s32.totalorder %s204, 0
    %s207 = sadd.s32 %s206, 1
    %s208 = scalar_select %p205, %s206, %s207
    %p211 = pneg %p205
    %p212 = scmp.eq.s32.totalorder %s14, 1
    %p213 = por %p211, %p212
    %p214 = scmp.ne.s32.totalorder %s206, %s209
    %p215 = scmp.eq.s32.totalorder %s14, 0
    %p216 = por %p214, %p215
    %p217 = scmp.ne.s32.totalorder %s206, %s209
    %p218 = scmp.eq.s32.totalorder %s19, 1
    %p219 = por %p217, %p218
    %p220 = scmp.ne.s32.totalorder %s209, %s210
    %p221 = scmp.eq.s32.totalorder %s19, 0
    %p222 = por %p220, %p221
    %p223 = scmp.ne.s32.totalorder %s209, %s210
    %p224 = scmp.eq.s32.totalorder %s20, 1
    %p225 = por %p223, %p224
    %p227 = scmp.ne.s32.totalorder %s210, %s226
    %p228 = scmp.eq.s32.totalorder %s20, 0
    %p229 = por %p227, %p228
    %p230 = scmp.le.s32.totalorder 1, %s14
    %p231 = scmp.lt.s32.totalorder %s14, 3
    %p232 = pnand %p230, %p231
    %p233 = pneg %p232
    // Predicated region
    $region9: #{eca_basic_block.4} parent=5 // pred_check
      _
    $region10: #{eca_basic_block.4} parent=5 // pred_check_branch
      %235 = sbr.rel (%p232) target = $region12
    $region11: #{eca_basic_block.4} parent=5 // pred_region
      %s236 = ssub.s32 %s14, 1
      // Predicated region
      $region13: #{eca_basic_block.4} parent=11 // pred_check
        %p237 = pneg %p103
      $region14: #{eca_basic_block.4} parent=11 // pred_check_branch
        %239 = sbr.rel (%p237) target = $region16
      $region15: #{eca_basic_block.4} parent=11 // pred_region
        _
      $region16: #{eca_basic_block.4} parent=11 // pred_fallthru
        _
      // Predicated region
      $region17: #{eca_basic_block.4} parent=11 // pred_check
        %p240 = pneg %p124
      $region18: #{eca_basic_block.4} parent=11 // pred_check_branch
        %242 = sbr.rel (%p240) target = $region20
      $region19: #{eca_basic_block.4} parent=11 // pred_region
        _
      $region20: #{eca_basic_block.4} parent=11 // pred_fallthru
        _
      // Predicated region
      $region21: #{eca_basic_block.4} parent=11 // pred_check
        %p243 = pneg %p145
      $region22: #{eca_basic_block.4} parent=11 // pred_check_branch
        %245 = sbr.rel (%p243) target = $region24
      $region23: #{eca_basic_block.4} parent=11 // pred_region
        _
      $region24: #{eca_basic_block.4} parent=11 // pred_fallthru
        _
      // Predicated region
      $region25: #{eca_basic_block.4} parent=11 // pred_check
        %p246 = pneg %p166
      $region26: #{eca_basic_block.4} parent=11 // pred_check_branch
        %248 = sbr.rel (%p246) target = $region28
      $region27: #{eca_basic_block.4} parent=11 // pred_region
        _
      $region28: #{eca_basic_block.4} parent=11 // pred_fallthru
        _
    $region12: #{eca_basic_block.4} parent=5 // pred_fallthru
      _
    %p249 = scmp.lt.s32.totalorder %s14, 2
    // Predicated region
    $region29: #{eca_basic_block.4} parent=5 // pred_check
      %p250 = pneg %p249
    $region30: #{eca_basic_block.4} parent=5 // pred_check_branch
      %252 = sbr.rel (%p250) target = $region32
    $region31: #{eca_basic_block.4} parent=5 // pred_region
      // Predicated region
      $region33: #{eca_basic_block.4} parent=31 // pred_check
        %p253 = pneg %p48
      $region34: #{eca_basic_block.4} parent=31 // pred_check_branch
        %255 = sbr.rel (%p253) target = $region36
      $region35: #{eca_basic_block.4} parent=31 // pred_region
        %s256 = smul.u32 2, %s22
        %p257 = scmp.lt.s32.totalorder %s21, 1
        %s258 = scalar_select %p257, %s21, 1
        %p259 = scmp.lt.s32.totalorder %s256, 1
        %s260 = scalar_select %p259, %s256, 1
        %s261 = smul.addr %s258, 2
        %s262 = sadd.s32 %s260, %s261
        %s263 = smul.addr %s262, 4
        %s264 = scalar_lea.vmem %s0, %s263
        %s265 = smul.u32 2, %s22
      $region36: #{eca_basic_block.4} parent=31 // pred_fallthru
        _
      // Predicated region
      $region37: #{eca_basic_block.4} parent=31 // pred_check
        %p266 = pneg %p76
      $region38: #{eca_basic_block.4} parent=31 // pred_check_branch
        %268 = sbr.rel (%p266) target = $region40
      $region39: #{eca_basic_block.4} parent=31 // pred_region
        %p269 = scmp.lt.s32.totalorder %s21, 1
        %s270 = scalar_select %p269, %s21, 1
        %p271 = scmp.lt.s32.totalorder %s22, 0
        %s272 = scalar_select %p271, %s22, 0
        %s273 = sadd.s32 %s272, %s270
        %s274 = smul.addr %s273, 2
        %s275 = scalar_lea.vmem %s1, %s274
      $region40: #{eca_basic_block.4} parent=31 // pred_fallthru
        _
    $region32: #{eca_basic_block.4} parent=5 // pred_fallthru
      _
    %p276 = scmp.le.s32.totalorder 1, %s14
    %p277 = scmp.lt.s32.totalorder %s14, 3
    %p278 = pnand %p276, %p277
    %p279 = pneg %p278
    // Predicated region
    $region41: #{eca_basic_block.4} parent=5 // pred_check
      _
    $region42: #{eca_basic_block.4} parent=5 // pred_check_branch
      %281 = sbr.rel (%p278) target = $region44
    $region43: #{eca_basic_block.4} parent=5 // pred_region
      %s282 = ssub.s32 %s14, 1
      %s283 = smul.u32 2, %s24
      %p284 = scmp.lt.s32.totalorder %s23, 1
      %s285 = scalar_select %p284, %s23, 1
      %p286 = scmp.lt.s32.totalorder %s283, 1
      %s287 = scalar_select %p286, %s283, 1
      %s288 = smul.addr %s285, 2
      %s289 = sadd.s32 %s287, %s288
      %s290 = smul.addr %s289, 4
      %s291 = scalar_lea.vmem %s0, %s290
      %p292 = pneg %p54
      %p293 = pneg %p51
      %p294 = scmp.lt.s32.totalorder %s23, 1
      %s295 = scalar_select %p294, %s23, 1
      %p296 = scmp.lt.s32.totalorder %s24, 0
      %s297 = scalar_select %p296, %s24, 0
      %s298 = sadd.s32 %s297, %s295
      %s299 = smul.addr %s298, 2
      %s300 = scalar_lea.vmem %s1, %s299
      %p301 = pneg %p82
      %p302 = pneg %p79
      %p303 = pneg %p103
      %p304 = pneg %p100
      %p305 = pneg %p124
      %p306 = pneg %p121
      %p307 = pneg %p145
      %p308 = pneg %p142
      %p309 = pneg %p166
      %p310 = pneg %p163
      %p311 = pneg %p194
      %p312 = pneg %p191
      %s313 = smul.u32 2, %s24
      %p314 = scmp.lt.s32.totalorder %s23, 1
      %s315 = scalar_select %p314, %s23, 1
      %p316 = scmp.lt.s32.totalorder %s313, 1
      %s317 = scalar_select %p316, %s313, 1
      %s318 = smul.addr %s315, 2
      %s319 = sadd.s32 %s317, %s318
      %s320 = smul.addr %s319, 4
      %s321 = scalar_lea.vmem %s6, %s320
      %p322 = pneg %p222
      %p323 = pneg %p219
      %p324 = scmp.lt.s32.totalorder %s23, 1
      %s325 = scalar_select %p324, %s23, 1
      %p326 = scmp.lt.s32.totalorder %s24, 0
      %s327 = scalar_select %p326, %s24, 0
      %s328 = sadd.s32 %s327, %s325
      %s329 = smul.addr %s328, 8
      %s330 = scalar_lea.vmem %s7, %s329
      %s331 = smul.u32 2, %s24
      %p332 = scmp.lt.s32.totalorder %s23, 1
      %s333 = scalar_select %p332, %s23, 1
      %p334 = scmp.lt.s32.totalorder %s331, 1
      %s335 = scalar_select %p334, %s331, 1
      %s336 = smul.addr %s333, 2
      %s337 = sadd.s32 %s335, %s336
      %s338 = smul.addr %s337, 4
      %s339 = scalar_lea.vmem %s0, %s338
      %s340 = smul.u32 2, %s24
      %p341 = scmp.lt.s32.totalorder %s23, 1
      %s342 = scalar_select %p341, %s23, 1
      %p343 = scmp.lt.s32.totalorder %s24, 0
      %s344 = scalar_select %p343, %s24, 0
      %s345 = sadd.s32 %s344, %s342
      %s346 = smul.addr %s345, 2
      %s347 = scalar_lea.vmem %s1, %s346
      %s348 = smul.u32 2, %s24
      %p349 = scmp.lt.s32.totalorder %s23, 1
      %s350 = scalar_select %p349, %s23, 1
      %p351 = scmp.lt.s32.totalorder %s348, 1
      %s352 = scalar_select %p351, %s348, 1
      %s353 = smul.addr %s350, 2
      %s354 = sadd.s32 %s352, %s353
      %s355 = smul.addr %s354, 4
      %s356 = scalar_lea.vmem %s6, %s355
      %s357 = smul.u32 2, %s24
      %p358 = scmp.lt.s32.totalorder %s23, 1
      %s359 = scalar_select %p358, %s23, 1
      %p360 = scmp.lt.s32.totalorder %s24, 0
      %s361 = scalar_select %p360, %s24, 0
      %s362 = sadd.s32 %s361, %s359
      %s363 = smul.addr %s362, 8
      %s364 = scalar_lea.vmem %s7, %s363
      %v366 = vld [vmem:[%s339] sm:$0xf]
      %v367 = vld [vmem:[%s339 + $0x4] sm:$0xf]
      %v368 = vunpack.c.l.bf16 %v366
      %v369 = vunpack.c.l.bf16 %v367
      %v370 = vld [vmem:[%s2] sm:$0x1]
      %v372 = vlaneseq
      %v373 = vshrl.u32 %v372, 7
      %v374 = vsub.s32 0, %v373
      %v375 = vrot.slane %v370, %v374
      %v377 = vmul.f32 %v368, %v375
      %v378 = vmul.f32 %v369, %v375
      %v379 = vld [vmem:[%s3] sm:$0x1]
      %v381 = vlaneseq
      %v382 = vshrl.u32 %v381, 7
      %v383 = vsub.s32 0, %v382
      %v384 = vrot.slane %v379, %v383
      %v386 = vadd.f32 %v377, %v384
      %v387 = vadd.f32 %v378, %v384
      %vm388 = vcmp.gt.f32.partialorder %v386, 0.0
      %vm389 = vcmp.gt.f32.partialorder %v387, 0.0
      %v390 = vmin.f32 %v386, 0.0
      %v391 = vmin.f32 %v387, 0.0
      %v392 = vmul.f32 %v390, 1.442695
      %v393 = vpow.pop %v392
      %v394 = vmul.f32 %v391, 1.442695
      %v395 = vpow.pop %v394
      %v396 = vsub.f32 %v393, 1.0
      %v397 = vsub.f32 %v395, 1.0
      %v398 = vsel %vm388, %v386, %v396
      %v399 = vsel %vm389, %v387, %v397
      %v400 = vlaneseq
      %v401 = vshrl.u32 %v400, 7
      %v402 = vadd.s32 %v401, 8
      %vm403 = vcmp.eq.s32.totalorder %v401, 0
      %vm404 = vcmp.eq.s32.totalorder %v402, 0
      %v405 = vld [vmem:[%s347] sm:$0x1]
      %v406 = vrot.slane %v398, 7
      %v407 = vrot.slane %v399, 7
      %vm408 = vcmp.lt.s32.totalorder %v401, 1
      %v409 = vsel %vm408, %v406, %v407
      %v410 = vsel %vm408, %v407, %v406
      %v411 = vlaneseq
      %v412 = vshrl.u32 %v411, 7
      %v413 = vsub.s32 0, %v412
      %v414 = vrot.slane %v405, %v413
      %v415 = vsel %vm403, %v414, %v410
      %v416 = vsel %vm404, %v414, %v409
      %vm417 = vcmp.eq.s32.totalorder %v401, 15
      %vm418 = vcmp.eq.s32.totalorder %v402, 15
      %v419 = vld [vmem:[%s347 + $0x1] sm:$0x1]
      %v420 = vrot.slane %v398, 1
      %v421 = vrot.slane %v399, 1
      %vm422 = vcmp.lt.s32.totalorder %v401, 7
      %v423 = vsel %vm422, %v420, %v421
      %v424 = vsel %vm422, %v421, %v420
      %v425 = vlaneseq
      %v426 = vshrl.u32 %v425, 7
      %v427 = vsub.s32 0, %v426
      %v428 = vrot.slane %v419, %v427
      %v429 = vsel %vm417, %v428, %v423
      %v430 = vsel %vm418, %v428, %v424
      %v431 = vpack.c.bf16 %v416, %v415
      %v432 = vld [vmem:[%s4] sm:$0xf]
      %v433 = vld [vmem:[%s4 + $0x4] sm:$0xf]
      %v434 = vld [vmem:[%s4 + $0x8] sm:$0xf]
      %v435 = vld [vmem:[%s4 + $0xc] sm:$0xf]
      %v436 = vld [vmem:[%s4 + $0x10] sm:$0xf]
      %v437 = vld [vmem:[%s4 + $0x14] sm:$0xf]
      %v438 = vld [vmem:[%s4 + $0x18] sm:$0xf]
      %v439 = vld [vmem:[%s4 + $0x1c] sm:$0xf]
      %v440 = vld [vmem:[%s4 + $0x20] sm:$0xf]
      %v441 = vld [vmem:[%s4 + $0x24] sm:$0xf]
      %v442 = vld [vmem:[%s4 + $0x28] sm:$0xf]
      %v443 = vld [vmem:[%s4 + $0x2c] sm:$0xf]
      %v444 = vld [vmem:[%s4 + $0x30] sm:$0xf]
      %v445 = vld [vmem:[%s4 + $0x34] sm:$0xf]
      %v446 = vld [vmem:[%s4 + $0x38] sm:$0xf]
      %v447 = vld [vmem:[%s4 + $0x3c] sm:$0xf]
      %v448 = vpack.c.bf16 %v399, %v398
      %s449 = scalar_lea.vmem %s4, 64
      %v450 = vld [vmem:[%s449] sm:$0xf]
      %v451 = vld [vmem:[%s449 + $0x4] sm:$0xf]
      %v452 = vld [vmem:[%s449 + $0x8] sm:$0xf]
      %v453 = vld [vmem:[%s449 + $0xc] sm:$0xf]
      %v454 = vld [vmem:[%s449 + $0x10] sm:$0xf]
      %v455 = vld [vmem:[%s449 + $0x14] sm:$0xf]
      %v456 = vld [vmem:[%s449 + $0x18] sm:$0xf]
      %v457 = vld [vmem:[%s449 + $0x1c] sm:$0xf]
      %v458 = vld [vmem:[%s449 + $0x20] sm:$0xf]
      %v459 = vld [vmem:[%s449 + $0x24] sm:$0xf]
      %v460 = vld [vmem:[%s449 + $0x28] sm:$0xf]
      %v461 = vld [vmem:[%s449 + $0x2c] sm:$0xf]
      %v462 = vld [vmem:[%s449 + $0x30] sm:$0xf]
      %v463 = vld [vmem:[%s449 + $0x34] sm:$0xf]
      %v464 = vld [vmem:[%s449 + $0x38] sm:$0xf]
      %v465 = vld [vmem:[%s449 + $0x3c] sm:$0xf]
      %v482 = vunpack.c.l.b16 %v450
      %v483 = vunpack.c.l.b16 %v451
      %v484 = vunpack.c.l.b16 %v452
      %v485 = vunpack.c.l.b16 %v453
      %v486 = vunpack.c.l.b16 %v454
      %v487 = vunpack.c.l.b16 %v455
      %v488 = vunpack.c.l.b16 %v456
      %v489 = vunpack.c.l.b16 %v457
      %v490 = vunpack.c.l.b16 %v458
      %v491 = vunpack.c.l.b16 %v459
      %v492 = vunpack.c.l.b16 %v460
      %v493 = vunpack.c.l.b16 %v461
      %v494 = vunpack.c.l.b16 %v462
      %v495 = vunpack.c.l.b16 %v463
      %v496 = vunpack.c.l.b16 %v464
      %v497 = vunpack.c.l.b16 %v465
      %v498 = vpack.c.b16 %v483, %v482
      %v499 = vpack.c.b16 %v485, %v484
      %v500 = vpack.c.b16 %v487, %v486
      %v501 = vpack.c.b16 %v489, %v488
      %v502 = vpack.c.b16 %v491, %v490
      %v503 = vpack.c.b16 %v493, %v492
      %v504 = vpack.c.b16 %v495, %v494
      %v505 = vpack.c.b16 %v497, %v496
      %514 = vmatprep.subr.bf16.mxu0 0
      %515 = vmatpush1.bf16.msra.mxu0 %v498
      %516 = vmatprep.subr.bf16.mxu0 0
      %517 = vmatpush1.bf16.msra.mxu0 %v499
      %518 = vmatprep.subr.bf16.mxu0 0
      %519 = vmatpush1.bf16.msra.mxu0 %v500
      %520 = vmatprep.subr.bf16.mxu0 0
      %521 = vmatpush1.bf16.msra.mxu0 %v501
      %522 = vmatprep.subr.bf16.mxu0 0
      %523 = vmatpush1.bf16.msra.mxu0 %v502
      %524 = vmatprep.subr.bf16.mxu0 0
      %525 = vmatpush1.bf16.msra.mxu0 %v503
      %526 = vmatprep.subr.bf16.mxu0 0
      %527 = vmatpush1.bf16.msra.mxu0 %v504
      %528 = vmatprep.subr.bf16.mxu0 0
      %529 = vmatpush1.bf16.msra.mxu0 %v505
      %530 = vmatprep.subr.bf16.mxu0 0
      %531 = vmatpush1.bf16.msra.mxu0 0
      %532 = vmatprep.subr.bf16.mxu0 0
      %533 = vmatpush1.bf16.msra.mxu0 0
      %534 = vmatprep.subr.bf16.mxu0 0
      %535 = vmatpush1.bf16.msra.mxu0 0
      %536 = vmatprep.subr.bf16.mxu0 0
      %537 = vmatpush1.bf16.msra.mxu0 0
      %538 = vmatprep.subr.bf16.mxu0 0
      %539 = vmatpush1.bf16.msra.mxu0 0
      %540 = vmatprep.subr.bf16.mxu0 0
      %541 = vmatpush1.bf16.msra.mxu0 0
      %542 = vmatprep.subr.bf16.mxu0 0
      %543 = vmatpush1.bf16.msra.mxu0 0
      %544 = vmatprep.subr.bf16.mxu0 0
      %545 = vmatpush1.bf16.msra.mxu0 0
      %546 = vmatprep.mubr.bf16.mxu0 0
      %547 = vmatmul.mubr.bf16.gmra.mrb[0].mxu0 %v448
      %v548 = vpop.f32.mrb[0].mxu0
      %v549 = vadd.f32 0.0, %v548
      %v550 = vpop.f32.mrb[0].mxu0
      %v551 = vpop.f32.mrb[0].mxu0
      %v552 = vadd.f32 0.0, %v551
      %v553 = vpop.f32.mrb[0].mxu0
      %554 = vdwg.mxu0
      %v571 = vunpack.c.l.b16 %v432
      %v572 = vunpack.c.l.b16 %v433
      %v573 = vunpack.c.l.b16 %v434
      %v574 = vunpack.c.l.b16 %v435
      %v575 = vunpack.c.l.b16 %v436
      %v576 = vunpack.c.l.b16 %v437
      %v577 = vunpack.c.l.b16 %v438
      %v578 = vunpack.c.l.b16 %v439
      %v579 = vunpack.c.l.b16 %v440
      %v580 = vunpack.c.l.b16 %v441
      %v581 = vunpack.c.l.b16 %v442
      %v582 = vunpack.c.l.b16 %v443
      %v583 = vunpack.c.l.b16 %v444
      %v584 = vunpack.c.l.b16 %v445
      %v585 = vunpack.c.l.b16 %v446
      %v586 = vunpack.c.l.b16 %v447
      %v587 = vpack.c.b16 %v572, %v571
      %v588 = vpack.c.b16 %v574, %v573
      %v589 = vpack.c.b16 %v576, %v575
      %v590 = vpack.c.b16 %v578, %v577
      %v591 = vpack.c.b16 %v580, %v579
      %v592 = vpack.c.b16 %v582, %v581
      %v593 = vpack.c.b16 %v584, %v583
      %v594 = vpack.c.b16 %v586, %v585
      %603 = vmatprep.subr.bf16.mxu0 0
      %604 = vmatpush1.bf16.msra.mxu0 %v587
      %605 = vmatprep.subr.bf16.mxu0 0
      %606 = vmatpush1.bf16.msra.mxu0 %v588
      %607 = vmatprep.subr.bf16.mxu0 0
      %608 = vmatpush1.bf16.msra.mxu0 %v589
      %609 = vmatprep.subr.bf16.mxu0 0
      %610 = vmatpush1.bf16.msra.mxu0 %v590
      %611 = vmatprep.subr.bf16.mxu0 0
      %612 = vmatpush1.bf16.msra.mxu0 %v591
      %613 = vmatprep.subr.bf16.mxu0 0
      %614 = vmatpush1.bf16.msra.mxu0 %v592
      %615 = vmatprep.subr.bf16.mxu0 0
      %616 = vmatpush1.bf16.msra.mxu0 %v593
      %617 = vmatprep.subr.bf16.mxu0 0
      %618 = vmatpush1.bf16.msra.mxu0 %v594
      %619 = vmatprep.subr.bf16.mxu0 0
      %620 = vmatpush1.bf16.msra.mxu0 0
      %621 = vmatprep.subr.bf16.mxu0 0
      %622 = vmatpush1.bf16.msra.mxu0 0
      %623 = vmatprep.subr.bf16.mxu0 0
      %624 = vmatpush1.bf16.msra.mxu0 0
      %625 = vmatprep.subr.bf16.mxu0 0
      %626 = vmatpush1.bf16.msra.mxu0 0
      %627 = vmatprep.subr.bf16.mxu0 0
      %628 = vmatpush1.bf16.msra.mxu0 0
      %629 = vmatprep.subr.bf16.mxu0 0
      %630 = vmatpush1.bf16.msra.mxu0 0
      %631 = vmatprep.subr.bf16.mxu0 0
      %632 = vmatpush1.bf16.msra.mxu0 0
      %633 = vmatprep.subr.bf16.mxu0 0
      %634 = vmatpush1.bf16.msra.mxu0 0
      %635 = vmatprep.mubr.bf16.mxu0 0
      %636 = vmatmul.mubr.bf16.gmra.mrb[0].mxu0 %v431
      %v637 = vpop.f32.mrb[0].mxu0
      %v638 = vadd.f32 %v549, %v637
      %v639 = vpop.f32.mrb[0].mxu0
      %v640 = vpop.f32.mrb[0].mxu0
      %v641 = vadd.f32 %v552, %v640
      %v642 = vpop.f32.mrb[0].mxu0
      %643 = vdwg.mxu0
      %v644 = vpack.c.bf16 %v430, %v429
      %s645 = scalar_lea.vmem %s4, 128
      %v646 = vld [vmem:[%s645] sm:$0xf]
      %v647 = vld [vmem:[%s645 + $0x4] sm:$0xf]
      %v648 = vld [vmem:[%s645 + $0x8] sm:$0xf]
      %v649 = vld [vmem:[%s645 + $0xc] sm:$0xf]
      %v650 = vld [vmem:[%s645 + $0x10] sm:$0xf]
      %v651 = vld [vmem:[%s645 + $0x14] sm:$0xf]
      %v652 = vld [vmem:[%s645 + $0x18] sm:$0xf]
      %v653 = vld [vmem:[%s645 + $0x1c] sm:$0xf]
      %v654 = vld [vmem:[%s645 + $0x20] sm:$0xf]
      %v655 = vld [vmem:[%s645 + $0x24] sm:$0xf]
      %v656 = vld [vmem:[%s645 + $0x28] sm:$0xf]
      %v657 = vld [vmem:[%s645 + $0x2c] sm:$0xf]
      %v658 = vld [vmem:[%s645 + $0x30] sm:$0xf]
      %v659 = vld [vmem:[%s645 + $0x34] sm:$0xf]
      %v660 = vld [vmem:[%s645 + $0x38] sm:$0xf]
      %v661 = vld [vmem:[%s645 + $0x3c] sm:$0xf]
      %v678 = vunpack.c.l.b16 %v646
      %v679 = vunpack.c.l.b16 %v647
      %v680 = vunpack.c.l.b16 %v648
      %v681 = vunpack.c.l.b16 %v649
      %v682 = vunpack.c.l.b16 %v650
      %v683 = vunpack.c.l.b16 %v651
      %v684 = vunpack.c.l.b16 %v652
      %v685 = vunpack.c.l.b16 %v653
      %v686 = vunpack.c.l.b16 %v654
      %v687 = vunpack.c.l.b16 %v655
      %v688 = vunpack.c.l.b16 %v656
      %v689 = vunpack.c.l.b16 %v657
      %v690 = vunpack.c.l.b16 %v658
      %v691 = vunpack.c.l.b16 %v659
      %v692 = vunpack.c.l.b16 %v660
      %v693 = vunpack.c.l.b16 %v661
      %v694 = vpack.c.b16 %v679, %v678
      %v695 = vpack.c.b16 %v681, %v680
      %v696 = vpack.c.b16 %v683, %v682
      %v697 = vpack.c.b16 %v685, %v684
      %v698 = vpack.c.b16 %v687, %v686
      %v699 = vpack.c.b16 %v689, %v688
      %v700 = vpack.c.b16 %v691, %v690
      %v701 = vpack.c.b16 %v693, %v692
      %710 = vmatprep.subr.bf16.mxu0 0
      %711 = vmatpush1.bf16.msra.mxu0 %v694
      %712 = vmatprep.subr.bf16.mxu0 0
      %713 = vmatpush1.bf16.msra.mxu0 %v695
      %714 = vmatprep.subr.bf16.mxu0 0
      %715 = vmatpush1.bf16.msra.mxu0 %v696
      %716 = vmatprep.subr.bf16.mxu0 0
      %717 = vmatpush1.bf16.msra.mxu0 %v697
      %718 = vmatprep.subr.bf16.mxu0 0
      %719 = vmatpush1.bf16.msra.mxu0 %v698
      %720 = vmatprep.subr.bf16.mxu0 0
      %721 = vmatpush1.bf16.msra.mxu0 %v699
      %722 = vmatprep.subr.bf16.mxu0 0
      %723 = vmatpush1.bf16.msra.mxu0 %v700
      %724 = vmatprep.subr.bf16.mxu0 0
      %725 = vmatpush1.bf16.msra.mxu0 %v701
      %726 = vmatprep.subr.bf16.mxu0 0
      %727 = vmatpush1.bf16.msra.mxu0 0
      %728 = vmatprep.subr.bf16.mxu0 0
      %729 = vmatpush1.bf16.msra.mxu0 0
      %730 = vmatprep.subr.bf16.mxu0 0
      %731 = vmatpush1.bf16.msra.mxu0 0
      %732 = vmatprep.subr.bf16.mxu0 0
      %733 = vmatpush1.bf16.msra.mxu0 0
      %734 = vmatprep.subr.bf16.mxu0 0
      %735 = vmatpush1.bf16.msra.mxu0 0
      %736 = vmatprep.subr.bf16.mxu0 0
      %737 = vmatpush1.bf16.msra.mxu0 0
      %738 = vmatprep.subr.bf16.mxu0 0
      %739 = vmatpush1.bf16.msra.mxu0 0
      %740 = vmatprep.subr.bf16.mxu0 0
      %741 = vmatpush1.bf16.msra.mxu0 0
      %742 = vmatprep.mubr.bf16.mxu0 0
      %743 = vmatmul.mubr.bf16.gmra.mrb[0].mxu0 %v644
      %v744 = vpop.f32.mrb[0].mxu0
      %v745 = vadd.f32 0.0, %v744
      %v746 = vpop.f32.mrb[0].mxu0
      %v747 = vpop.f32.mrb[0].mxu0
      %v748 = vadd.f32 0.0, %v747
      %v749 = vpop.f32.mrb[0].mxu0
      %750 = vdwg.mxu0
      %v751 = vadd.f32 %v638, %v745
      %v752 = vadd.f32 %v641, %v748
      %v753 = vld [vmem:[%s5] sm:$0x1]
      %v755 = vlaneseq
      %v756 = vshrl.u32 %v755, 7
      %v757 = vsub.s32 0, %v756
      %v758 = vrot.slane %v753, %v757
      %v760 = vadd.f32 %v751, %v758
      %v761 = vadd.f32 %v752, %v758
      %v762 = vpack.c.bf16 %v761, %v760
      %v764 = vunpack.c.l.b16 %v762
      %v765 = vunpack.c.h.b16 %v762
      %v766 = vpack.c.b16 %v764, %v764
      %v767 = vpack.c.b16 %v765, %v765
      %770 = vst [vmem:[%s356] sm:$0xf] %v766
      %771 = vst [vmem:[%s356 + $0x4] sm:$0xf] %v767
      %v772 = vadd.f32 %v760, %v761
      %v773 = vrot.slane %v772, 4
      %v774 = vadd.f32 %v772, %v773
      %v775 = vrot.slane %v774, 2
      %v776 = vadd.f32 %v774, %v775
      %v777 = vrot.slane %v776, 1
      %v778 = vadd.f32 %v776, %v777
      %v779 = vmul.f32 %v760, %v760
      %v780 = vmul.f32 %v761, %v761
      %v781 = vadd.f32 %v779, %v780
      %v782 = vrot.slane %v781, 4
      %v783 = vadd.f32 %v781, %v782
      %v784 = vrot.slane %v783, 2
      %v785 = vadd.f32 %v783, %v784
      %v786 = vrot.slane %v785, 1
      %v787 = vadd.f32 %v785, %v786
      %vm788 = vcmask 1040384
      %v789 = vsel %vm788, %v778, %v787
      %vm790 = vcmask 1041408
      %v791 = vsel %vm790, %v789, 0.0
      %792 = vst [vmem:[%s364] sm:$0xff] %v791
      %s793 = smul.u32 2, %s24
      %p794 = scmp.lt.s32.totalorder %s23, 1
      %s795 = scalar_select %p794, %s23, 1
      %p796 = scmp.lt.s32.totalorder %s793, 1
      %s797 = scalar_select %p796, %s793, 1
      %s798 = smul.addr %s795, 2
      %s799 = sadd.s32 %s797, %s798
      %s800 = smul.addr %s799, 4
      %s801 = scalar_lea.vmem %s6, %s800
      %p802 = scmp.lt.s32.totalorder %s23, 1
      %s803 = scalar_select %p802, %s23, 1
      %p804 = scmp.lt.s32.totalorder %s24, 0
      %s805 = scalar_select %p804, %s24, 0
      %s806 = sadd.s32 %s805, %s803
      %s807 = smul.addr %s806, 8
      %s808 = scalar_lea.vmem %s7, %s807
      // Predicated region
      $region45: #{eca_basic_block.4} parent=43 // pred_check
        %p809 = pneg %p191
      $region46: #{eca_basic_block.4} parent=43 // pred_check_branch
        %811 = sbr.rel (%p809) target = $region48
      $region47: #{eca_basic_block.4} parent=43 // pred_region
        %s812 = smul.u32 2, %s24
      $region48: #{eca_basic_block.4} parent=43 // pred_fallthru
        _
      // Predicated region
      $region49: #{eca_basic_block.4} parent=43 // pred_check
        %p813 = pneg %p219
      $region50: #{eca_basic_block.4} parent=43 // pred_check_branch
        %815 = sbr.rel (%p813) target = $region52
      $region51: #{eca_basic_block.4} parent=43 // pred_region
        _
      $region52: #{eca_basic_block.4} parent=43 // pred_fallthru
        _
    $region44: #{eca_basic_block.4} parent=5 // pred_fallthru
      _
    %p816 = scmp.le.s32.totalorder 2, %s14
    // Predicated region
    $region53: #{eca_basic_block.4} parent=5 // pred_check
      %p817 = pneg %p816
    $region54: #{eca_basic_block.4} parent=5 // pred_check_branch
      %819 = sbr.rel (%p817) target = $region56
    $region55: #{eca_basic_block.4} parent=5 // pred_region
      %s820 = ssub.s32 %s14, 2
      // Predicated region
      $region57: #{eca_basic_block.4} parent=55 // pred_check
        %p821 = pneg %p197
      $region58: #{eca_basic_block.4} parent=55 // pred_check_branch
        %823 = sbr.rel (%p821) target = $region60
      $region59: #{eca_basic_block.4} parent=55 // pred_region
        %s824 = smul.u32 2, %s26
        %p825 = scmp.lt.s32.totalorder %s25, 1
        %s826 = scalar_select %p825, %s25, 1
        %p827 = scmp.lt.s32.totalorder %s824, 1
        %s828 = scalar_select %p827, %s824, 1
        %s829 = smul.addr %s826, 2
        %s830 = sadd.s32 %s828, %s829
        %s831 = smul.addr %s830, 4
        %s832 = scalar_lea.vmem %s6, %s831
      $region60: #{eca_basic_block.4} parent=55 // pred_fallthru
        _
      // Predicated region
      $region61: #{eca_basic_block.4} parent=55 // pred_check
        %p833 = pneg %p225
      $region62: #{eca_basic_block.4} parent=55 // pred_check_branch
        %835 = sbr.rel (%p833) target = $region64
      $region63: #{eca_basic_block.4} parent=55 // pred_region
        %p836 = scmp.lt.s32.totalorder %s25, 1
        %s837 = scalar_select %p836, %s25, 1
        %p838 = scmp.lt.s32.totalorder %s26, 0
        %s839 = scalar_select %p838, %s26, 0
        %s840 = sadd.s32 %s839, %s837
        %s841 = smul.addr %s840, 8
        %s842 = scalar_lea.vmem %s7, %s841
      $region64: #{eca_basic_block.4} parent=55 // pred_fallthru
        _
    $region56: #{eca_basic_block.4} parent=5 // pred_fallthru
      _
  $region6: #{eca_basic_block.4} parent=0 // loop_footer
    %s18 = sadd.s32 1, %s14
  $region7: #{eca_basic_block.4} parent=0 // loop_footer_branch
    %13 = sbr.rel target = $region3
  $region8: #{eca_basic_block.4} parent=0 // loop_exit
    _

// kernel: eca_basic_block.3
$region0: #{eca_basic_block.3}
  #allocation0 [shape = 'u32[]', space=smem, size = 0x4, offset = 0x4, fixed_abs, tag = 'smem constant byte address 0x4 - core index']
  #allocation1 [shape = 'u32[144,128]{1,0:T(1,128)}', space=vmem, size = 0x12000, scoped, tag = 'internal scratch']
  %s0 = inlined_call_operand.vmem [shape: f32[2,16,128], index: 0, kind: input, shape index: {}]
  %s1 = inlined_call_operand.vmem [shape: f32[2,1,2,128], index: 1, kind: input, shape index: {}]
  %s2 = inlined_call_operand.vmem [shape: bf16[128,128], index: 2, kind: input, shape index: {}]
  %s3 = inlined_call_operand.vmem [shape: bf16[128,256], index: 3, kind: input, shape index: {}]
  %s4 = inlined_call_operand.vmem [shape: bf16[128,128], index: 4, kind: input, shape index: {}]
  %s5 = inlined_call_operand.vmem [shape: f32[1,256], index: 5, kind: input, shape index: {}]
  %s6 = inlined_call_operand.vmem [shape: bf16[2,16,128], index: 6, kind: output, shape index: {0}]
  %s7 = inlined_call_operand.vmem [shape: bf16[2,16,128], index: 7, kind: output, shape index: {1}]
  %s8 = inlined_call_operand.vmem [shape: f32[2,1,8,128], index: 8, kind: output, shape index: {2}]
  %9 = xla_tuple %s6, %s7, %s8
  %s10 = sld [smem:[#allocation0]]
  $region73: #{eca_basic_block.3} parent=0
    _
  %s12 = ssub.s32 1, %s10
  %s13 = scalar_select 0, %s12, %s10
  loop: start=0, step=1, limit=4
  $region2: #{eca_basic_block.3} parent=0 // loop_pre_header
    _
  $region3: #{eca_basic_block.3} parent=0 // loop_header
    %s15 = sphi 0, %s19
    %p16 = scmp.ge.s32.totalorder %s15, 4
    %s22 = sphi 0, %s34
    %s23 = sphi 0, %s30
    %s24 = sphi 0, %s22
    %s25 = sphi 0, %s23
    %s26 = sphi 0, %s24
    %s27 = sphi 0, %s25
    %s39 = sphi 0, %s41
    %s42 = sphi 0, %s39
    %s43 = sphi 0, %s42
    %s59 = sphi 0, %s43
    %s67 = sphi 0, %s69
    %s70 = sphi 0, %s67
    %s71 = sphi 0, %s70
    %s87 = sphi 0, %s71
    %s91 = sphi 0, %s91
    %s93 = sphi 0, %s91
    %s94 = sphi 0, %s93
    %s108 = sphi 0, %s94
    %s112 = sphi 0, %s112
    %s114 = sphi 0, %s112
    %s115 = sphi 0, %s114
    %s129 = sphi 0, %s115
    %s133 = sphi 0, %s133
    %s135 = sphi 0, %s133
    %s136 = sphi 0, %s135
    %s150 = sphi 0, %s136
    %s154 = sphi 0, %s154
    %s156 = sphi 0, %s154
    %s157 = sphi 0, %s156
    %s171 = sphi 0, %s157
    %s179 = sphi 0, %s181
    %s182 = sphi 0, %s179
    %s183 = sphi 0, %s182
    %s199 = sphi 0, %s183
    %s207 = sphi 0, %s209
    %s210 = sphi 0, %s207
    %s211 = sphi 0, %s210
    %s227 = sphi 0, %s211
    %s235 = sphi 0, %s237
    %s238 = sphi 0, %s235
    %s239 = sphi 0, %s238
    %s255 = sphi 0, %s239
  $region4: #{eca_basic_block.3} parent=0 // loop_header_branch
    %18 = sbr.rel (%p16) target = $region8
  $region5: #{eca_basic_block.3} parent=0 // loop_body
    %s20 = ssub.s32 %s15, 1
    %s21 = ssub.s32 %s15, 2
    %s28 = sadd.s32 1, %s23
    %p29 = scmp.ge.s32.totalorder %s28, 1
    %s30 = scalar_select %p29, 0, %s28
    %s31 = sadd.s32 1, %s22
    %s32 = scalar_select %p29, %s31, %s22
    %p33 = scmp.ge.s32.totalorder %s32, 2
    %s34 = scalar_select %p33, 0, %s32
    %s35 = ssub.s32 %s22, %s34
    %s36 = ssub.s32 %s23, %s30
    %s37 = sor.u32 %s35, %s36
    %p38 = scmp.eq.s32.totalorder %s37, 0
    %s40 = sadd.s32 %s39, 1
    %s41 = scalar_select %p38, %s39, %s40
    %p44 = pneg %p38
    %p45 = scmp.eq.s32.totalorder %s15, 1
    %p46 = por %p44, %p45
    %p47 = scmp.ne.s32.totalorder %s39, %s42
    %p48 = scmp.eq.s32.totalorder %s15, 0
    %p49 = por %p47, %p48
    %p50 = scmp.ne.s32.totalorder %s39, %s42
    %p51 = scmp.eq.s32.totalorder %s20, 1
    %p52 = por %p50, %p51
    %p53 = scmp.ne.s32.totalorder %s42, %s43
    %p54 = scmp.eq.s32.totalorder %s20, 0
    %p55 = por %p53, %p54
    %p56 = scmp.ne.s32.totalorder %s42, %s43
    %p57 = scmp.eq.s32.totalorder %s21, 1
    %p58 = por %p56, %p57
    %p60 = scmp.ne.s32.totalorder %s43, %s59
    %p61 = scmp.eq.s32.totalorder %s21, 0
    %p62 = por %p60, %p61
    %s63 = ssub.s32 %s22, %s34
    %s64 = ssub.s32 %s23, %s30
    %s65 = sor.u32 %s63, %s64
    %p66 = scmp.eq.s32.totalorder %s65, 0
    %s68 = sadd.s32 %s67, 1
    %s69 = scalar_select %p66, %s67, %s68
    %p72 = pneg %p66
    %p73 = scmp.eq.s32.totalorder %s15, 1
    %p74 = por %p72, %p73
    %p75 = scmp.ne.s32.totalorder %s67, %s70
    %p76 = scmp.eq.s32.totalorder %s15, 0
    %p77 = por %p75, %p76
    %p78 = scmp.ne.s32.totalorder %s67, %s70
    %p79 = scmp.eq.s32.totalorder %s20, 1
    %p80 = por %p78, %p79
    %p81 = scmp.ne.s32.totalorder %s70, %s71
    %p82 = scmp.eq.s32.totalorder %s20, 0
    %p83 = por %p81, %p82
    %p84 = scmp.ne.s32.totalorder %s70, %s71
    %p85 = scmp.eq.s32.totalorder %s21, 1
    %p86 = por %p84, %p85
    %p88 = scmp.ne.s32.totalorder %s71, %s87
    %p89 = scmp.eq.s32.totalorder %s21, 0
    %p90 = por %p88, %p89
    %s92 = sadd.s32 %s91, 1
    %p95 = scmp.eq.s32.totalorder %s15, 1
    %p96 = scmp.ne.s32.totalorder %s91, %s93
    %p97 = scmp.eq.s32.totalorder %s15, 0
    %p98 = por %p96, %p97
    %p99 = scmp.ne.s32.totalorder %s91, %s93
    %p100 = scmp.eq.s32.totalorder %s20, 1
    %p101 = por %p99, %p100
    %p102 = scmp.ne.s32.totalorder %s93, %s94
    %p103 = scmp.eq.s32.totalorder %s20, 0
    %p104 = por %p102, %p103
    %p105 = scmp.ne.s32.totalorder %s93, %s94
    %p106 = scmp.eq.s32.totalorder %s21, 1
    %p107 = por %p105, %p106
    %p109 = scmp.ne.s32.totalorder %s94, %s108
    %p110 = scmp.eq.s32.totalorder %s21, 0
    %p111 = por %p109, %p110
    %s113 = sadd.s32 %s112, 1
    %p116 = scmp.eq.s32.totalorder %s15, 1
    %p117 = scmp.ne.s32.totalorder %s112, %s114
    %p118 = scmp.eq.s32.totalorder %s15, 0
    %p119 = por %p117, %p118
    %p120 = scmp.ne.s32.totalorder %s112, %s114
    %p121 = scmp.eq.s32.totalorder %s20, 1
    %p122 = por %p120, %p121
    %p123 = scmp.ne.s32.totalorder %s114, %s115
    %p124 = scmp.eq.s32.totalorder %s20, 0
    %p125 = por %p123, %p124
    %p126 = scmp.ne.s32.totalorder %s114, %s115
    %p127 = scmp.eq.s32.totalorder %s21, 1
    %p128 = por %p126, %p127
    %p130 = scmp.ne.s32.totalorder %s115, %s129
    %p131 = scmp.eq.s32.totalorder %s21, 0
    %p132 = por %p130, %p131
    %s134 = sadd.s32 %s133, 1
    %p137 = scmp.eq.s32.totalorder %s15, 1
    %p138 = scmp.ne.s32.totalorder %s133, %s135
    %p139 = scmp.eq.s32.totalorder %s15, 0
    %p140 = por %p138, %p139
    %p141 = scmp.ne.s32.totalorder %s133, %s135
    %p142 = scmp.eq.s32.totalorder %s20, 1
    %p143 = por %p141, %p142
    %p144 = scmp.ne.s32.totalorder %s135, %s136
    %p145 = scmp.eq.s32.totalorder %s20, 0
    %p146 = por %p144, %p145
    %p147 = scmp.ne.s32.totalorder %s135, %s136
    %p148 = scmp.eq.s32.totalorder %s21, 1
    %p149 = por %p147, %p148
    %p151 = scmp.ne.s32.totalorder %s136, %s150
    %p152 = scmp.eq.s32.totalorder %s21, 0
    %p153 = por %p151, %p152
    %s155 = sadd.s32 %s154, 1
    %p158 = scmp.eq.s32.totalorder %s15, 1
    %p159 = scmp.ne.s32.totalorder %s154, %s156
    %p160 = scmp.eq.s32.totalorder %s15, 0
    %p161 = por %p159, %p160
    %p162 = scmp.ne.s32.totalorder %s154, %s156
    %p163 = scmp.eq.s32.totalorder %s20, 1
    %p164 = por %p162, %p163
    %p165 = scmp.ne.s32.totalorder %s156, %s157
    %p166 = scmp.eq.s32.totalorder %s20, 0
    %p167 = por %p165, %p166
    %p168 = scmp.ne.s32.totalorder %s156, %s157
    %p169 = scmp.eq.s32.totalorder %s21, 1
    %p170 = por %p168, %p169
    %p172 = scmp.ne.s32.totalorder %s157, %s171
    %p173 = scmp.eq.s32.totalorder %s21, 0
    %p174 = por %p172, %p173
    %s175 = ssub.s32 %s22, %s34
    %s176 = ssub.s32 %s23, %s30
    %s177 = sor.u32 %s175, %s176
    %p178 = scmp.eq.s32.totalorder %s177, 0
    %s180 = sadd.s32 %s179, 1
    %s181 = scalar_select %p178, %s179, %s180
    %p184 = pneg %p178
    %p185 = scmp.eq.s32.totalorder %s15, 1
    %p186 = por %p184, %p185
    %p187 = scmp.ne.s32.totalorder %s179, %s182
    %p188 = scmp.eq.s32.totalorder %s15, 0
    %p189 = por %p187, %p188
    %p190 = scmp.ne.s32.totalorder %s179, %s182
    %p191 = scmp.eq.s32.totalorder %s20, 1
    %p192 = por %p190, %p191
    %p193 = scmp.ne.s32.totalorder %s182, %s183
    %p194 = scmp.eq.s32.totalorder %s20, 0
    %p195 = por %p193, %p194
    %p196 = scmp.ne.s32.totalorder %s182, %s183
    %p197 = scmp.eq.s32.totalorder %s21, 1
    %p198 = por %p196, %p197
    %p200 = scmp.ne.s32.totalorder %s183, %s199
    %p201 = scmp.eq.s32.totalorder %s21, 0
    %p202 = por %p200, %p201
    %s203 = ssub.s32 %s22, %s34
    %s204 = ssub.s32 %s23, %s30
    %s205 = sor.u32 %s203, %s204
    %p206 = scmp.eq.s32.totalorder %s205, 0
    %s208 = sadd.s32 %s207, 1
    %s209 = scalar_select %p206, %s207, %s208
    %p212 = pneg %p206
    %p213 = scmp.eq.s32.totalorder %s15, 1
    %p214 = por %p212, %p213
    %p215 = scmp.ne.s32.totalorder %s207, %s210
    %p216 = scmp.eq.s32.totalorder %s15, 0
    %p217 = por %p215, %p216
    %p218 = scmp.ne.s32.totalorder %s207, %s210
    %p219 = scmp.eq.s32.totalorder %s20, 1
    %p220 = por %p218, %p219
    %p221 = scmp.ne.s32.totalorder %s210, %s211
    %p222 = scmp.eq.s32.totalorder %s20, 0
    %p223 = por %p221, %p222
    %p224 = scmp.ne.s32.totalorder %s210, %s211
    %p225 = scmp.eq.s32.totalorder %s21, 1
    %p226 = por %p224, %p225
    %p228 = scmp.ne.s32.totalorder %s211, %s227
    %p229 = scmp.eq.s32.totalorder %s21, 0
    %p230 = por %p228, %p229
    %s231 = ssub.s32 %s22, %s34
    %s232 = ssub.s32 %s23, %s30
    %s233 = sor.u32 %s231, %s232
    %p234 = scmp.eq.s32.totalorder %s233, 0
    %s236 = sadd.s32 %s235, 1
    %s237 = scalar_select %p234, %s235, %s236
    %p240 = pneg %p234
    %p241 = scmp.eq.s32.totalorder %s15, 1
    %p242 = por %p240, %p241
    %p243 = scmp.ne.s32.totalorder %s235, %s238
    %p244 = scmp.eq.s32.totalorder %s15, 0
    %p245 = por %p243, %p244
    %p246 = scmp.ne.s32.totalorder %s235, %s238
    %p247 = scmp.eq.s32.totalorder %s20, 1
    %p248 = por %p246, %p247
    %p249 = scmp.ne.s32.totalorder %s238, %s239
    %p250 = scmp.eq.s32.totalorder %s20, 0
    %p251 = por %p249, %p250
    %p252 = scmp.ne.s32.totalorder %s238, %s239
    %p253 = scmp.eq.s32.totalorder %s21, 1
    %p254 = por %p252, %p253
    %p256 = scmp.ne.s32.totalorder %s239, %s255
    %p257 = scmp.eq.s32.totalorder %s21, 0
    %p258 = por %p256, %p257
    %p259 = scmp.le.s32.totalorder 1, %s15
    %p260 = scmp.lt.s32.totalorder %s15, 3
    %p261 = pnand %p259, %p260
    %p262 = pneg %p261
    // Predicated region
    $region9: #{eca_basic_block.3} parent=5 // pred_check
      _
    $region10: #{eca_basic_block.3} parent=5 // pred_check_branch
      %264 = sbr.rel (%p261) target = $region12
    $region11: #{eca_basic_block.3} parent=5 // pred_region
      %s265 = ssub.s32 %s15, 1
      // Predicated region
      $region13: #{eca_basic_block.3} parent=11 // pred_check
        %p266 = pneg %p104
      $region14: #{eca_basic_block.3} parent=11 // pred_check_branch
        %268 = sbr.rel (%p266) target = $region16
      $region15: #{eca_basic_block.3} parent=11 // pred_region
        _
      $region16: #{eca_basic_block.3} parent=11 // pred_fallthru
        _
      // Predicated region
      $region17: #{eca_basic_block.3} parent=11 // pred_check
        %p269 = pneg %p125
      $region18: #{eca_basic_block.3} parent=11 // pred_check_branch
        %271 = sbr.rel (%p269) target = $region20
      $region19: #{eca_basic_block.3} parent=11 // pred_region
        _
      $region20: #{eca_basic_block.3} parent=11 // pred_fallthru
        _
      // Predicated region
      $region21: #{eca_basic_block.3} parent=11 // pred_check
        %p272 = pneg %p146
      $region22: #{eca_basic_block.3} parent=11 // pred_check_branch
        %274 = sbr.rel (%p272) target = $region24
      $region23: #{eca_basic_block.3} parent=11 // pred_region
        _
      $region24: #{eca_basic_block.3} parent=11 // pred_fallthru
        _
      // Predicated region
      $region25: #{eca_basic_block.3} parent=11 // pred_check
        %p275 = pneg %p167
      $region26: #{eca_basic_block.3} parent=11 // pred_check_branch
        %277 = sbr.rel (%p275) target = $region28
      $region27: #{eca_basic_block.3} parent=11 // pred_region
        _
      $region28: #{eca_basic_block.3} parent=11 // pred_fallthru
        _
    $region12: #{eca_basic_block.3} parent=5 // pred_fallthru
      _
    %p278 = scmp.lt.s32.totalorder %s15, 2
    // Predicated region
    $region29: #{eca_basic_block.3} parent=5 // pred_check
      %p279 = pneg %p278
    $region30: #{eca_basic_block.3} parent=5 // pred_check_branch
      %281 = sbr.rel (%p279) target = $region32
    $region31: #{eca_basic_block.3} parent=5 // pred_region
      // Predicated region
      $region33: #{eca_basic_block.3} parent=31 // pred_check
        %p282 = pneg %p49
      $region34: #{eca_basic_block.3} parent=31 // pred_check_branch
        %284 = sbr.rel (%p282) target = $region36
      $region35: #{eca_basic_block.3} parent=31 // pred_region
        %s285 = smul.u32 2, %s23
        %p286 = scmp.lt.s32.totalorder %s22, 1
        %s287 = scalar_select %p286, %s22, 1
        %p288 = scmp.lt.s32.totalorder %s285, 1
        %s289 = scalar_select %p288, %s285, 1
        %s290 = smul.addr %s287, 2
        %s291 = sadd.s32 %s289, %s290
        %s292 = smul.addr %s291, 8
        %s293 = scalar_lea.vmem %s0, %s292
        %s294 = smul.u32 2, %s23
      $region36: #{eca_basic_block.3} parent=31 // pred_fallthru
        _
      // Predicated region
      $region37: #{eca_basic_block.3} parent=31 // pred_check
        %p295 = pneg %p77
      $region38: #{eca_basic_block.3} parent=31 // pred_check_branch
        %297 = sbr.rel (%p295) target = $region40
      $region39: #{eca_basic_block.3} parent=31 // pred_region
        %p298 = scmp.lt.s32.totalorder %s22, 1
        %s299 = scalar_select %p298, %s22, 1
        %p300 = scmp.lt.s32.totalorder %s23, 0
        %s301 = scalar_select %p300, %s23, 0
        %s302 = sadd.s32 %s301, %s299
        %s303 = smul.addr %s302, 2
        %s304 = scalar_lea.vmem %s1, %s303
      $region40: #{eca_basic_block.3} parent=31 // pred_fallthru
        _
    $region32: #{eca_basic_block.3} parent=5 // pred_fallthru
      _
    %p305 = scmp.le.s32.totalorder 1, %s15
    %p306 = scmp.lt.s32.totalorder %s15, 3
    %p307 = pnand %p305, %p306
    %p308 = pneg %p307
    // Predicated region
    $region41: #{eca_basic_block.3} parent=5 // pred_check
      _
    $region42: #{eca_basic_block.3} parent=5 // pred_check_branch
      %310 = sbr.rel (%p307) target = $region44
    $region43: #{eca_basic_block.3} parent=5 // pred_region
      %s311 = ssub.s32 %s15, 1
      %s312 = smul.u32 2, %s25
      %p313 = scmp.lt.s32.totalorder %s24, 1
      %s314 = scalar_select %p313, %s24, 1
      %p315 = scmp.lt.s32.totalorder %s312, 1
      %s316 = scalar_select %p315, %s312, 1
      %s317 = smul.addr %s314, 2
      %s318 = sadd.s32 %s316, %s317
      %s319 = smul.addr %s318, 8
      %s320 = scalar_lea.vmem %s0, %s319
      %p321 = pneg %p55
      %p322 = pneg %p52
      %p323 = scmp.lt.s32.totalorder %s24, 1
      %s324 = scalar_select %p323, %s24, 1
      %p325 = scmp.lt.s32.totalorder %s25, 0
      %s326 = scalar_select %p325, %s25, 0
      %s327 = sadd.s32 %s326, %s324
      %s328 = smul.addr %s327, 2
      %s329 = scalar_lea.vmem %s1, %s328
      %p330 = pneg %p83
      %p331 = pneg %p80
      %p332 = pneg %p104
      %p333 = pneg %p101
      %p334 = pneg %p125
      %p335 = pneg %p122
      %p336 = pneg %p146
      %p337 = pneg %p143
      %p338 = pneg %p167
      %p339 = pneg %p164
      %p340 = pneg %p195
      %p341 = pneg %p192
      %s342 = smul.u32 2, %s25
      %p343 = scmp.lt.s32.totalorder %s24, 1
      %s344 = scalar_select %p343, %s24, 1
      %p345 = scmp.lt.s32.totalorder %s342, 1
      %s346 = scalar_select %p345, %s342, 1
      %s347 = smul.addr %s344, 2
      %s348 = sadd.s32 %s346, %s347
      %s349 = smul.addr %s348, 4
      %s350 = scalar_lea.vmem %s6, %s349
      %p351 = pneg %p223
      %p352 = pneg %p220
      %s353 = smul.u32 2, %s25
      %p354 = scmp.lt.s32.totalorder %s24, 1
      %s355 = scalar_select %p354, %s24, 1
      %p356 = scmp.lt.s32.totalorder %s353, 1
      %s357 = scalar_select %p356, %s353, 1
      %s358 = smul.addr %s355, 2
      %s359 = sadd.s32 %s357, %s358
      %s360 = smul.addr %s359, 4
      %s361 = scalar_lea.vmem %s7, %s360
      %p362 = pneg %p251
      %p363 = pneg %p248
      %p364 = scmp.lt.s32.totalorder %s24, 1
      %s365 = scalar_select %p364, %s24, 1
      %p366 = scmp.lt.s32.totalorder %s25, 0
      %s367 = scalar_select %p366, %s25, 0
      %s368 = sadd.s32 %s367, %s365
      %s369 = smul.addr %s368, 8
      %s370 = scalar_lea.vmem %s8, %s369
      %s371 = smul.u32 2, %s25
      %p372 = scmp.lt.s32.totalorder %s24, 1
      %s373 = scalar_select %p372, %s24, 1
      %p374 = scmp.lt.s32.totalorder %s371, 1
      %s375 = scalar_select %p374, %s371, 1
      %s376 = smul.addr %s373, 2
      %s377 = sadd.s32 %s375, %s376
      %s378 = smul.addr %s377, 8
      %s379 = scalar_lea.vmem %s0, %s378
      %s380 = smul.u32 2, %s25
      %p381 = scmp.lt.s32.totalorder %s24, 1
      %s382 = scalar_select %p381, %s24, 1
      %p383 = scmp.lt.s32.totalorder %s25, 0
      %s384 = scalar_select %p383, %s25, 0
      %s385 = sadd.s32 %s384, %s382
      %s386 = smul.addr %s385, 2
      %s387 = scalar_lea.vmem %s1, %s386
      %s388 = smul.u32 2, %s25
      %p389 = scmp.lt.s32.totalorder %s24, 1
      %s390 = scalar_select %p389, %s24, 1
      %p391 = scmp.lt.s32.totalorder %s388, 1
      %s392 = scalar_select %p391, %s388, 1
      %s393 = smul.addr %s390, 2
      %s394 = sadd.s32 %s392, %s393
      %s395 = smul.addr %s394, 4
      %s396 = scalar_lea.vmem %s6, %s395
      %s397 = smul.u32 2, %s25
      %s398 = smul.u32 2, %s25
      %p399 = scmp.lt.s32.totalorder %s24, 1
      %s400 = scalar_select %p399, %s24, 1
      %p401 = scmp.lt.s32.totalorder %s398, 1
      %s402 = scalar_select %p401, %s398, 1
      %s403 = smul.addr %s400, 2
      %s404 = sadd.s32 %s402, %s403
      %s405 = smul.addr %s404, 4
      %s406 = scalar_lea.vmem %s7, %s405
      %s407 = smul.u32 2, %s25
      %p408 = scmp.lt.s32.totalorder %s24, 1
      %s409 = scalar_select %p408, %s24, 1
      %p410 = scmp.lt.s32.totalorder %s25, 0
      %s411 = scalar_select %p410, %s25, 0
      %s412 = sadd.s32 %s411, %s409
      %s413 = smul.addr %s412, 8
      %s414 = scalar_lea.vmem %s8, %s413
      %v416 = vld [vmem:[%s379] sm:$0xff]
      %v417 = vld [vmem:[%s379 + $0x8] sm:$0xff]
      %v418 = vlaneseq
      %v419 = vshrl.u32 %v418, 7
      %v420 = vadd.s32 %v419, 8
      %vm421 = vcmp.eq.s32.totalorder %v419, 0
      %vm422 = vcmp.eq.s32.totalorder %v420, 0
      %v423 = vld [vmem:[%s387] sm:$0x1]
      %v424 = vrot.slane %v416, 7
      %v425 = vrot.slane %v417, 7
      %vm426 = vcmp.lt.s32.totalorder %v419, 1
      %v427 = vsel %vm426, %v424, %v425
      %v428 = vsel %vm426, %v425, %v424
      %v429 = vlaneseq
      %v430 = vshrl.u32 %v429, 7
      %v431 = vsub.s32 0, %v430
      %v432 = vrot.slane %v423, %v431
      %v433 = vsel %vm421, %v432, %v428
      %v434 = vsel %vm422, %v432, %v427
      %vm435 = vcmp.eq.s32.totalorder %v419, 15
      %vm436 = vcmp.eq.s32.totalorder %v420, 15
      %v437 = vld [vmem:[%s387 + $0x1] sm:$0x1]
      %v438 = vrot.slane %v416, 1
      %v439 = vrot.slane %v417, 1
      %vm440 = vcmp.lt.s32.totalorder %v419, 7
      %v441 = vsel %vm440, %v438, %v439
      %v442 = vsel %vm440, %v439, %v438
      %v443 = vlaneseq
      %v444 = vshrl.u32 %v443, 7
      %v445 = vsub.s32 0, %v444
      %v446 = vrot.slane %v437, %v445
      %v447 = vsel %vm435, %v446, %v441
      %v448 = vsel %vm436, %v446, %v442
      %v449 = vpack.c.bf16 %v417, %v416
      %v450 = vld [vmem:[%s3] sm:$0xff]
      %v451 = vld [vmem:[%s3 + $0x8] sm:$0xff]
      %v452 = vld [vmem:[%s3 + $0x10] sm:$0xff]
      %v453 = vld [vmem:[%s3 + $0x18] sm:$0xff]
      %v454 = vld [vmem:[%s3 + $0x20] sm:$0xff]
      %v455 = vld [vmem:[%s3 + $0x28] sm:$0xff]
      %v456 = vld [vmem:[%s3 + $0x30] sm:$0xff]
      %v457 = vld [vmem:[%s3 + $0x38] sm:$0xff]
      %v458 = vld [vmem:[%s3 + $0x40] sm:$0xff]
      %v459 = vld [vmem:[%s3 + $0x48] sm:$0xff]
      %v460 = vld [vmem:[%s3 + $0x50] sm:$0xff]
      %v461 = vld [vmem:[%s3 + $0x58] sm:$0xff]
      %v462 = vld [vmem:[%s3 + $0x60] sm:$0xff]
      %v463 = vld [vmem:[%s3 + $0x68] sm:$0xff]
      %v464 = vld [vmem:[%s3 + $0x70] sm:$0xff]
      %v465 = vld [vmem:[%s3 + $0x78] sm:$0xff]
      %v466 = vld [vmem:[%s5] sm:$0x3]
      %v468 = vlaneseq
      %v469 = vshrl.u32 %v468, 7
      %v470 = vsub.s32 0, %v469
      %v471 = vrot.slane %v466, %v470
      %v472 = vlaneseq
      %v473 = vshrl.u32 %v472, 7
      %v474 = vsub.s32 1, %v473
      %v475 = vrot.slane %v466, %v474
      %v494 = vunpack.c.l.b16 %v450
      %v495 = vunpack.c.h.b16 %v450
      %v496 = vunpack.c.l.b16 %v451
      %v497 = vunpack.c.h.b16 %v451
      %v498 = vunpack.c.l.b16 %v452
      %v499 = vunpack.c.h.b16 %v452
      %v500 = vunpack.c.l.b16 %v453
      %v501 = vunpack.c.h.b16 %v453
      %v502 = vunpack.c.l.b16 %v454
      %v503 = vunpack.c.h.b16 %v454
      %v504 = vunpack.c.l.b16 %v455
      %v505 = vunpack.c.h.b16 %v455
      %v506 = vunpack.c.l.b16 %v456
      %v507 = vunpack.c.h.b16 %v456
      %v508 = vunpack.c.l.b16 %v457
      %v509 = vunpack.c.h.b16 %v457
      %v510 = vunpack.c.l.b16 %v458
      %v511 = vunpack.c.h.b16 %v458
      %v512 = vunpack.c.l.b16 %v459
      %v513 = vunpack.c.h.b16 %v459
      %v514 = vunpack.c.l.b16 %v460
      %v515 = vunpack.c.h.b16 %v460
      %v516 = vunpack.c.l.b16 %v461
      %v517 = vunpack.c.h.b16 %v461
      %v518 = vunpack.c.l.b16 %v462
      %v519 = vunpack.c.h.b16 %v462
      %v520 = vunpack.c.l.b16 %v463
      %v521 = vunpack.c.h.b16 %v463
      %v522 = vunpack.c.l.b16 %v464
      %v523 = vunpack.c.h.b16 %v464
      %v524 = vunpack.c.l.b16 %v465
      %v525 = vunpack.c.h.b16 %v465
      %v526 = vpack.c.b16 %v496, %v494
      %v527 = vpack.c.b16 %v497, %v495
      %v528 = vpack.c.b16 %v500, %v498
      %v529 = vpack.c.b16 %v501, %v499
      %v530 = vpack.c.b16 %v504, %v502
      %v531 = vpack.c.b16 %v505, %v503
      %v532 = vpack.c.b16 %v508, %v506
      %v533 = vpack.c.b16 %v509, %v507
      %v534 = vpack.c.b16 %v512, %v510
      %v535 = vpack.c.b16 %v513, %v511
      %v536 = vpack.c.b16 %v516, %v514
      %v537 = vpack.c.b16 %v517, %v515
      %v538 = vpack.c.b16 %v520, %v518
      %v539 = vpack.c.b16 %v521, %v519
      %v540 = vpack.c.b16 %v524, %v522
      %v541 = vpack.c.b16 %v525, %v523
      %558 = vmatprep.subr.bf16.mxu0 %v527
      %559 = vmatpush1.bf16.msra.mxu0 %v526
      %560 = vmatprep.subr.bf16.mxu0 %v529
      %561 = vmatpush1.bf16.msra.mxu0 %v528
      %562 = vmatprep.subr.bf16.mxu0 %v531
      %563 = vmatpush1.bf16.msra.mxu0 %v530
      %564 = vmatprep.subr.bf16.mxu0 %v533
      %565 = vmatpush1.bf16.msra.mxu0 %v532
      %566 = vmatprep.subr.bf16.mxu0 %v535
      %567 = vmatpush1.bf16.msra.mxu0 %v534
      %568 = vmatprep.subr.bf16.mxu0 %v537
      %569 = vmatpush1.bf16.msra.mxu0 %v536
      %570 = vmatprep.subr.bf16.mxu0 %v539
      %571 = vmatpush1.bf16.msra.mxu0 %v538
      %572 = vmatprep.subr.bf16.mxu0 %v541
      %573 = vmatpush1.bf16.msra.mxu0 %v540
      %574 = vmatprep.subr.bf16.mxu0 0
      %575 = vmatpush1.bf16.msra.mxu0 0
      %576 = vmatprep.subr.bf16.mxu0 0
      %577 = vmatpush1.bf16.msra.mxu0 0
      %578 = vmatprep.subr.bf16.mxu0 0
      %579 = vmatpush1.bf16.msra.mxu0 0
      %580 = vmatprep.subr.bf16.mxu0 0
      %581 = vmatpush1.bf16.msra.mxu0 0
      %582 = vmatprep.subr.bf16.mxu0 0
      %583 = vmatpush1.bf16.msra.mxu0 0
      %584 = vmatprep.subr.bf16.mxu0 0
      %585 = vmatpush1.bf16.msra.mxu0 0
      %586 = vmatprep.subr.bf16.mxu0 0
      %587 = vmatpush1.bf16.msra.mxu0 0
      %588 = vmatprep.subr.bf16.mxu0 0
      %589 = vmatpush1.bf16.msra.mxu0 0
      %590 = vmatprep.mubr.bf16.mxu0 0
      %591 = vmatmul.mubr.bf16.gmra.mrb[0].mxu0 %v449
      %v592 = vpop.f32.mrb[0].mxu0
      %v593 = vadd.f32 %v471, %v592
      %v594 = vpop.f32.mrb[0].mxu0
      %v595 = vadd.f32 %v475, %v594
      %v596 = vpop.f32.mrb[0].mxu0
      %v597 = vadd.f32 %v471, %v596
      %v598 = vpop.f32.mrb[0].mxu0
      %v599 = vadd.f32 %v475, %v598
      %600 = vdwg.mxu0
      %v601 = vpack.c.bf16 %v434, %v433
      %v602 = vld [vmem:[%s2] sm:$0xf]
      %v603 = vld [vmem:[%s2 + $0x4] sm:$0xf]
      %v604 = vld [vmem:[%s2 + $0x8] sm:$0xf]
      %v605 = vld [vmem:[%s2 + $0xc] sm:$0xf]
      %v606 = vld [vmem:[%s2 + $0x10] sm:$0xf]
      %v607 = vld [vmem:[%s2 + $0x14] sm:$0xf]
      %v608 = vld [vmem:[%s2 + $0x18] sm:$0xf]
      %v609 = vld [vmem:[%s2 + $0x1c] sm:$0xf]
      %v610 = vld [vmem:[%s2 + $0x20] sm:$0xf]
      %v611 = vld [vmem:[%s2 + $0x24] sm:$0xf]
      %v612 = vld [vmem:[%s2 + $0x28] sm:$0xf]
      %v613 = vld [vmem:[%s2 + $0x2c] sm:$0xf]
      %v614 = vld [vmem:[%s2 + $0x30] sm:$0xf]
      %v615 = vld [vmem:[%s2 + $0x34] sm:$0xf]
      %v616 = vld [vmem:[%s2 + $0x38] sm:$0xf]
      %v617 = vld [vmem:[%s2 + $0x3c] sm:$0xf]
      %v634 = vunpack.c.l.b16 %v602
      %v635 = vunpack.c.l.b16 %v603
      %v636 = vunpack.c.l.b16 %v604
      %v637 = vunpack.c.l.b16 %v605
      %v638 = vunpack.c.l.b16 %v606
      %v639 = vunpack.c.l.b16 %v607
      %v640 = vunpack.c.l.b16 %v608
      %v641 = vunpack.c.l.b16 %v609
      %v642 = vunpack.c.l.b16 %v610
      %v643 = vunpack.c.l.b16 %v611
      %v644 = vunpack.c.l.b16 %v612
      %v645 = vunpack.c.l.b16 %v613
      %v646 = vunpack.c.l.b16 %v614
      %v647 = vunpack.c.l.b16 %v615
      %v648 = vunpack.c.l.b16 %v616
      %v649 = vunpack.c.l.b16 %v617
      %v650 = vpack.c.b16 %v635, %v634
      %v651 = vpack.c.b16 %v637, %v636
      %v652 = vpack.c.b16 %v639, %v638
      %v653 = vpack.c.b16 %v641, %v640
      %v654 = vpack.c.b16 %v643, %v642
      %v655 = vpack.c.b16 %v645, %v644
      %v656 = vpack.c.b16 %v647, %v646
      %v657 = vpack.c.b16 %v649, %v648
      %666 = vmatprep.subr.bf16.mxu0 0
      %667 = vmatpush1.bf16.msra.mxu0 %v650
      %668 = vmatprep.subr.bf16.mxu0 0
      %669 = vmatpush1.bf16.msra.mxu0 %v651
      %670 = vmatprep.subr.bf16.mxu0 0
      %671 = vmatpush1.bf16.msra.mxu0 %v652
      %672 = vmatprep.subr.bf16.mxu0 0
      %673 = vmatpush1.bf16.msra.mxu0 %v653
      %674 = vmatprep.subr.bf16.mxu0 0
      %675 = vmatpush1.bf16.msra.mxu0 %v654
      %676 = vmatprep.subr.bf16.mxu0 0
      %677 = vmatpush1.bf16.msra.mxu0 %v655
      %678 = vmatprep.subr.bf16.mxu0 0
      %679 = vmatpush1.bf16.msra.mxu0 %v656
      %680 = vmatprep.subr.bf16.mxu0 0
      %681 = vmatpush1.bf16.msra.mxu0 %v657
      %682 = vmatprep.subr.bf16.mxu0 0
      %683 = vmatpush1.bf16.msra.mxu0 0
      %684 = vmatprep.subr.bf16.mxu0 0
      %685 = vmatpush1.bf16.msra.mxu0 0
      %686 = vmatprep.subr.bf16.mxu0 0
      %687 = vmatpush1.bf16.msra.mxu0 0
      %688 = vmatprep.subr.bf16.mxu0 0
      %689 = vmatpush1.bf16.msra.mxu0 0
      %690 = vmatprep.subr.bf16.mxu0 0
      %691 = vmatpush1.bf16.msra.mxu0 0
      %692 = vmatprep.subr.bf16.mxu0 0
      %693 = vmatpush1.bf16.msra.mxu0 0
      %694 = vmatprep.subr.bf16.mxu0 0
      %695 = vmatpush1.bf16.msra.mxu0 0
      %696 = vmatprep.subr.bf16.mxu0 0
      %697 = vmatpush1.bf16.msra.mxu0 0
      %698 = vmatprep.mubr.bf16.mxu0 0
      %699 = vmatmul.mubr.bf16.gmra.mrb[0].mxu0 %v601
      %v700 = vpop.f32.mrb[0].mxu0
      %v701 = vadd.f32 0.0, %v700
      %v702 = vpop.f32.mrb[0].mxu0
      %v703 = vpop.f32.mrb[0].mxu0
      %v704 = vadd.f32 0.0, %v703
      %v705 = vpop.f32.mrb[0].mxu0
      %706 = vdwg.mxu0
      %v707 = vadd.f32 %v593, %v701
      %v708 = vadd.f32 %v597, %v704
      %v709 = vpack.c.bf16 %v448, %v447
      %v710 = vld [vmem:[%s4] sm:$0xf]
      %v711 = vld [vmem:[%s4 + $0x4] sm:$0xf]
      %v712 = vld [vmem:[%s4 + $0x8] sm:$0xf]
      %v713 = vld [vmem:[%s4 + $0xc] sm:$0xf]
      %v714 = vld [vmem:[%s4 + $0x10] sm:$0xf]
      %v715 = vld [vmem:[%s4 + $0x14] sm:$0xf]
      %v716 = vld [vmem:[%s4 + $0x18] sm:$0xf]
      %v717 = vld [vmem:[%s4 + $0x1c] sm:$0xf]
      %v718 = vld [vmem:[%s4 + $0x20] sm:$0xf]
      %v719 = vld [vmem:[%s4 + $0x24] sm:$0xf]
      %v720 = vld [vmem:[%s4 + $0x28] sm:$0xf]
      %v721 = vld [vmem:[%s4 + $0x2c] sm:$0xf]
      %v722 = vld [vmem:[%s4 + $0x30] sm:$0xf]
      %v723 = vld [vmem:[%s4 + $0x34] sm:$0xf]
      %v724 = vld [vmem:[%s4 + $0x38] sm:$0xf]
      %v725 = vld [vmem:[%s4 + $0x3c] sm:$0xf]
      %v742 = vunpack.c.l.b16 %v710
      %v743 = vunpack.c.l.b16 %v711
      %v744 = vunpack.c.l.b16 %v712
      %v745 = vunpack.c.l.b16 %v713
      %v746 = vunpack.c.l.b16 %v714
      %v747 = vunpack.c.l.b16 %v715
      %v748 = vunpack.c.l.b16 %v716
      %v749 = vunpack.c.l.b16 %v717
      %v750 = vunpack.c.l.b16 %v718
      %v751 = vunpack.c.l.b16 %v719
      %v752 = vunpack.c.l.b16 %v720
      %v753 = vunpack.c.l.b16 %v721
      %v754 = vunpack.c.l.b16 %v722
      %v755 = vunpack.c.l.b16 %v723
      %v756 = vunpack.c.l.b16 %v724
      %v757 = vunpack.c.l.b16 %v725
      %v758 = vpack.c.b16 %v743, %v742
      %v759 = vpack.c.b16 %v745, %v744
      %v760 = vpack.c.b16 %v747, %v746
      %v761 = vpack.c.b16 %v749, %v748
      %v762 = vpack.c.b16 %v751, %v750
      %v763 = vpack.c.b16 %v753, %v752
      %v764 = vpack.c.b16 %v755, %v754
      %v765 = vpack.c.b16 %v757, %v756
      %774 = vmatprep.subr.bf16.mxu0 0
      %775 = vmatpush1.bf16.msra.mxu0 %v758
      %776 = vmatprep.subr.bf16.mxu0 0
      %777 = vmatpush1.bf16.msra.mxu0 %v759
      %778 = vmatprep.subr.bf16.mxu0 0
      %779 = vmatpush1.bf16.msra.mxu0 %v760
      %780 = vmatprep.subr.bf16.mxu0 0
      %781 = vmatpush1.bf16.msra.mxu0 %v761
      %782 = vmatprep.subr.bf16.mxu0 0
      %783 = vmatpush1.bf16.msra.mxu0 %v762
      %784 = vmatprep.subr.bf16.mxu0 0
      %785 = vmatpush1.bf16.msra.mxu0 %v763
      %786 = vmatprep.subr.bf16.mxu0 0
      %787 = vmatpush1.bf16.msra.mxu0 %v764
      %788 = vmatprep.subr.bf16.mxu0 0
      %789 = vmatpush1.bf16.msra.mxu0 %v765
      %790 = vmatprep.subr.bf16.mxu0 0
      %791 = vmatpush1.bf16.msra.mxu0 0
      %792 = vmatprep.subr.bf16.mxu0 0
      %793 = vmatpush1.bf16.msra.mxu0 0
      %794 = vmatprep.subr.bf16.mxu0 0
      %795 = vmatpush1.bf16.msra.mxu0 0
      %796 = vmatprep.subr.bf16.mxu0 0
      %797 = vmatpush1.bf16.msra.mxu0 0
      %798 = vmatprep.subr.bf16.mxu0 0
      %799 = vmatpush1.bf16.msra.mxu0 0
      %800 = vmatprep.subr.bf16.mxu0 0
      %801 = vmatpush1.bf16.msra.mxu0 0
      %802 = vmatprep.subr.bf16.mxu0 0
      %803 = vmatpush1.bf16.msra.mxu0 0
      %804 = vmatprep.subr.bf16.mxu0 0
      %805 = vmatpush1.bf16.msra.mxu0 0
      %806 = vmatprep.mubr.bf16.mxu0 0
      %807 = vmatmul.mubr.bf16.gmra.mrb[0].mxu0 %v709
      %v808 = vpop.f32.mrb[0].mxu0
      %v809 = vadd.f32 0.0, %v808
      %v810 = vpop.f32.mrb[0].mxu0
      %v811 = vpop.f32.mrb[0].mxu0
      %v812 = vadd.f32 0.0, %v811
      %v813 = vpop.f32.mrb[0].mxu0
      %814 = vdwg.mxu0
      %v815 = vadd.f32 %v707, %v809
      %v816 = vadd.f32 %v708, %v812
      %v817 = vpack.c.bf16 %v816, %v815
      %v819 = vunpack.c.l.b16 %v817
      %v820 = vunpack.c.h.b16 %v817
      %v821 = vpack.c.b16 %v819, %v819
      %v822 = vpack.c.b16 %v820, %v820
      %825 = vst [vmem:[%s396] sm:$0xf] %v821
      %826 = vst [vmem:[%s396 + $0x4] sm:$0xf] %v822
      %v827 = vpack.c.bf16 %v599, %v595
      %v829 = vunpack.c.l.b16 %v827
      %v830 = vunpack.c.h.b16 %v827
      %v831 = vpack.c.b16 %v829, %v829
      %v832 = vpack.c.b16 %v830, %v830
      %835 = vst [vmem:[%s406] sm:$0xf] %v831
      %836 = vst [vmem:[%s406 + $0x4] sm:$0xf] %v832
      %v837 = vadd.f32 %v815, %v816
      %v838 = vrot.slane %v837, 4
      %v839 = vadd.f32 %v837, %v838
      %v840 = vrot.slane %v839, 2
      %v841 = vadd.f32 %v839, %v840
      %v842 = vrot.slane %v841, 1
      %v843 = vadd.f32 %v841, %v842
      %v844 = vmul.f32 %v815, %v815
      %v845 = vmul.f32 %v816, %v816
      %v846 = vadd.f32 %v844, %v845
      %v847 = vrot.slane %v846, 4
      %v848 = vadd.f32 %v846, %v847
      %v849 = vrot.slane %v848, 2
      %v850 = vadd.f32 %v848, %v849
      %v851 = vrot.slane %v850, 1
      %v852 = vadd.f32 %v850, %v851
      %v853 = vadd.f32 %v595, %v599
      %v854 = vrot.slane %v853, 4
      %v855 = vadd.f32 %v853, %v854
      %v856 = vrot.slane %v855, 2
      %v857 = vadd.f32 %v855, %v856
      %v858 = vrot.slane %v857, 1
      %v859 = vadd.f32 %v857, %v858
      %v860 = vmul.f32 %v595, %v595
      %v861 = vmul.f32 %v599, %v599
      %v862 = vadd.f32 %v860, %v861
      %v863 = vrot.slane %v862, 4
      %v864 = vadd.f32 %v862, %v863
      %v865 = vrot.slane %v864, 2
      %v866 = vadd.f32 %v864, %v865
      %v867 = vrot.slane %v866, 1
      %v868 = vadd.f32 %v866, %v867
      %vm869 = vcmask 1040384
      %v870 = vsel %vm869, %v843, %v852
      %vm871 = vcmask 1041408
      %v872 = vsel %vm871, %v870, %v859
      %vm873 = vcmask 1042432
      %v874 = vsel %vm873, %v872, %v868
      %vm875 = vcmask 1043456
      %v876 = vsel %vm875, %v874, 0.0
      %877 = vst [vmem:[%s414] sm:$0xff] %v876
      %s878 = smul.u32 2, %s25
      %p879 = scmp.lt.s32.totalorder %s24, 1
      %s880 = scalar_select %p879, %s24, 1
      %p881 = scmp.lt.s32.totalorder %s878, 1
      %s882 = scalar_select %p881, %s878, 1
      %s883 = smul.addr %s880, 2
      %s884 = sadd.s32 %s882, %s883
      %s885 = smul.addr %s884, 4
      %s886 = scalar_lea.vmem %s6, %s885
      %s887 = smul.u32 2, %s25
      %p888 = scmp.lt.s32.totalorder %s24, 1
      %s889 = scalar_select %p888, %s24, 1
      %p890 = scmp.lt.s32.totalorder %s887, 1
      %s891 = scalar_select %p890, %s887, 1
      %s892 = smul.addr %s889, 2
      %s893 = sadd.s32 %s891, %s892
      %s894 = smul.addr %s893, 4
      %s895 = scalar_lea.vmem %s7, %s894
      %p896 = scmp.lt.s32.totalorder %s24, 1
      %s897 = scalar_select %p896, %s24, 1
      %p898 = scmp.lt.s32.totalorder %s25, 0
      %s899 = scalar_select %p898, %s25, 0
      %s900 = sadd.s32 %s899, %s897
      %s901 = smul.addr %s900, 8
      %s902 = scalar_lea.vmem %s8, %s901
      // Predicated region
      $region45: #{eca_basic_block.3} parent=43 // pred_check
        %p903 = pneg %p192
      $region46: #{eca_basic_block.3} parent=43 // pred_check_branch
        %905 = sbr.rel (%p903) target = $region48
      $region47: #{eca_basic_block.3} parent=43 // pred_region
        %s906 = smul.u32 2, %s25
      $region48: #{eca_basic_block.3} parent=43 // pred_fallthru
        _
      // Predicated region
      $region49: #{eca_basic_block.3} parent=43 // pred_check
        %p907 = pneg %p220
      $region50: #{eca_basic_block.3} parent=43 // pred_check_branch
        %909 = sbr.rel (%p907) target = $region52
      $region51: #{eca_basic_block.3} parent=43 // pred_region
        %s910 = smul.u32 2, %s25
      $region52: #{eca_basic_block.3} parent=43 // pred_fallthru
        _
      // Predicated region
      $region53: #{eca_basic_block.3} parent=43 // pred_check
        %p911 = pneg %p248
      $region54: #{eca_basic_block.3} parent=43 // pred_check_branch
        %913 = sbr.rel (%p911) target = $region56
      $region55: #{eca_basic_block.3} parent=43 // pred_region
        _
      $region56: #{eca_basic_block.3} parent=43 // pred_fallthru
        _
    $region44: #{eca_basic_block.3} parent=5 // pred_fallthru
      _
    %p914 = scmp.le.s32.totalorder 2, %s15
    // Predicated region
    $region57: #{eca_basic_block.3} parent=5 // pred_check
      %p915 = pneg %p914
    $region58: #{eca_basic_block.3} parent=5 // pred_check_branch
      %917 = sbr.rel (%p915) target = $region60
    $region59: #{eca_basic_block.3} parent=5 // pred_region
      %s918 = ssub.s32 %s15, 2
      // Predicated region
      $region61: #{eca_basic_block.3} parent=59 // pred_check
        %p919 = pneg %p198
      $region62: #{eca_basic_block.3} parent=59 // pred_check_branch
        %921 = sbr.rel (%p919) target = $region64
      $region63: #{eca_basic_block.3} parent=59 // pred_region
        %s922 = smul.u32 2, %s27
        %p923 = scmp.lt.s32.totalorder %s26, 1
        %s924 = scalar_select %p923, %s26, 1
        %p925 = scmp.lt.s32.totalorder %s922, 1
        %s926 = scalar_select %p925, %s922, 1
        %s927 = smul.addr %s924, 2
        %s928 = sadd.s32 %s926, %s927
        %s929 = smul.addr %s928, 4
        %s930 = scalar_lea.vmem %s6, %s929
      $region64: #{eca_basic_block.3} parent=59 // pred_fallthru
        _
      // Predicated region
      $region65: #{eca_basic_block.3} parent=59 // pred_check
        %p931 = pneg %p226
      $region66: #{eca_basic_block.3} parent=59 // pred_check_branch
        %933 = sbr.rel (%p931) target = $region68
      $region67: #{eca_basic_block.3} parent=59 // pred_region
        %s934 = smul.u32 2, %s27
        %p935 = scmp.lt.s32.totalorder %s26, 1
        %s936 = scalar_select %p935, %s26, 1
        %p937 = scmp.lt.s32.totalorder %s934, 1
        %s938 = scalar_select %p937, %s934, 1
        %s939 = smul.addr %s936, 2
        %s940 = sadd.s32 %s938, %s939
        %s941 = smul.addr %s940, 4
        %s942 = scalar_lea.vmem %s7, %s941
      $region68: #{eca_basic_block.3} parent=59 // pred_fallthru
        _
      // Predicated region
      $region69: #{eca_basic_block.3} parent=59 // pred_check
        %p943 = pneg %p254
      $region70: #{eca_basic_block.3} parent=59 // pred_check_branch
        %945 = sbr.rel (%p943) target = $region72
      $region71: #{eca_basic_block.3} parent=59 // pred_region
        %p946 = scmp.lt.s32.totalorder %s26, 1
        %s947 = scalar_select %p946, %s26, 1
        %p948 = scmp.lt.s32.totalorder %s27, 0
        %s949 = scalar_select %p948, %s27, 0
        %s950 = sadd.s32 %s949, %s947
        %s951 = smul.addr %s950, 8
        %s952 = scalar_lea.vmem %s8, %s951
      $region72: #{eca_basic_block.3} parent=59 // pred_fallthru
        _
    $region60: #{eca_basic_block.3} parent=5 // pred_fallthru
      _
  $region6: #{eca_basic_block.3} parent=0 // loop_footer
    %s19 = sadd.s32 1, %s15
  $region7: #{eca_basic_block.3} parent=0 // loop_footer_branch
    %14 = sbr.rel target = $region3
  $region8: #{eca_basic_block.3} parent=0 // loop_exit
    _

</llo_original>
